<compile_context>
chip_gen: v7x
topology: tpu7x:2x2x1
jax: 0.10.0
libtpu: 0.0.40
codegen_flags: <defaults>
</compile_context>

<pallas_src>
import numpy as np

import jax
import jax.numpy as jnp
from jax.experimental import pallas as pl
from jax.experimental.pallas import tpu as pltpu

# ----------------------------------------------------------------------------
# Problem sizes (small stand-ins consistent with the module structure)
# ----------------------------------------------------------------------------
ACTION_DIM = 7
IMAGE_DIM = (4, 16, 16)            # (C, H, W) -- small stand-in for (4,128,128)
JOINT_DIM = 7 * 2
WAYPOINT_DIM = 3
STATE_DIM = JOINT_DIM + WAYPOINT_DIM                      # 17
BATCH = 2
S_POS = (IMAGE_DIM[1] // 4) * (IMAGE_DIM[2] // 4)         # 16 conv2 output positions
FLAT_DIM = 64 * S_POS                                     # 1024

# ---- packed-weight-slab layout (row offsets are multiples of 8) ------------
TAP_W = IMAGE_DIM[0] * 9 + 1                              # 36 im2col vals + validity = 37
K1 = 9 * TAP_W                                            # 333
K1P = ((K1 + 7) // 8) * 8                                 # 336 (zero-padded K)
A1S_ROWS = ((STATE_DIM + 7) // 8) * 8                     # 24

OFF_W1 = 0                                                # (K1, 288)  block-diag conv1
OFF_W2 = OFF_W1 + K1P                                     # (288, 64)  packed conv2
OFF_FC = OFF_W2 + 288                                     # (1024, 256) fc
OFF_A1S = OFF_FC + FLAT_DIM                               # (17, 128)  actor/critic L1 (state)
OFF_A1I = OFF_A1S + A1S_ROWS                              # (256, 128) actor/critic L1 (image)
OFF_A2 = OFF_A1I + 256                                    # (128, 64)  actor/critic L2 block-diag
OFF_A3 = OFF_A2 + 128                                     # (64, 8)    actor/critic L3 block-diag
SLAB_ROWS = OFF_A3 + 64                                   # 2120
SLAB_COLS = 288

# ---- packed-bias layout (lane offsets are multiples of 128 where possible) -
BO_C2 = 0                                                 # 64   conv2 bias
BO_FC = 128                                               # 256  fc bias
BO_AC1 = 384                                              # 128  [actor1 | critic1] bias
BO_AC2 = 512                                              # 64   block-diag L2 bias
BO_AC3 = 640                                              # 8    block-diag L3 bias
BIAS_COLS = 768


# ----------------------------------------------------------------------------
# Fused Pallas kernel
# ----------------------------------------------------------------------------
def _policy_fused_kernel(patches_ref, state_ref, w_ref, b_ref, out_ref, flat_scr):
    """
    patches_ref: (S*B, K1P)        bf16  nested im2col patches + validity flags
    state_ref:   (B, STATE_DIM)    f32
    w_ref:       (SLAB_ROWS, 288)  bf16  all weights, packed (see layout above)
    b_ref:       (1, BIAS_COLS)    f32   all biases, packed
    out_ref:     (B, ACTION_DIM+1) f32   [mean | value]
    flat_scr:    (B, S*64)         f32   NCHW-flatten relayout scratch (VMEM)
    """
    f32, bf16 = jnp.float32, jnp.bfloat16
    B = state_ref.shape[0]
    S = patches_ref.shape[0] // B
    A1 = out_ref.shape[1]

    # ---- conv1 + ReLU fused with conv2 + ReLU: two MXU matmuls -------------
    # W1 block t holds [conv1_w ; conv1_b]; the validity column supplies the
    # "1" multiplying the bias, and is 0 on conv2's zero-padding ring, so the
    # padded taps contribute exactly zero (no mask needed).
    h1 = jnp.dot(patches_ref[...], w_ref[OFF_W1:OFF_W1 + K1P, :],
                 preferred_element_type=f32)                        # (S*B, 288)
    h1 = jnp.maximum(h1, 0.0)                                       # conv1 ReLU
    h2 = jnp.dot(h1.astype(bf16), w_ref[OFF_W2:OFF_W2 + 288, 0:64],
                 preferred_element_type=f32)                        # (S*B, 64)
    h2 = jnp.maximum(h2 + b_ref[:, BO_C2:BO_C2 + 64], 0.0)          # conv2 bias+ReLU

    # ---- relayout (S*B, 64) spatial-major -> (B, S*64) for one deep-K fc ---
    for s in range(S):                       # static unroll; lane-offset stores
        flat_scr[:, s * 64:(s + 1) * 64] = h2[s * B:(s + 1) * B, :]

    fc = jnp.dot(flat_scr[...].astype(bf16),
                 w_ref[OFF_FC:OFF_FC + FLAT_DIM, 0:256],
                 preferred_element_type=f32)                        # (B, 256)
    img = jnp.maximum(fc + b_ref[:, BO_FC:BO_FC + 256], 0.0)

    # ---- actor & critic (concatenated N=128 layer 1; block-diag layers 2/3)
    st = state_ref[...].astype(bf16)
    h = (jnp.dot(st, w_ref[OFF_A1S:OFF_A1S + STATE_DIM, 0:128],
                 preferred_element_type=f32)
         + jnp.dot(img.astype(bf16), w_ref[OFF_A1I:OFF_A1I + 256, 0:128],
                   preferred_element_type=f32))
    h = jnp.tanh(h + b_ref[:, BO_AC1:BO_AC1 + 128])                 # (B, 128)
    h = jnp.tanh(jnp.dot(h.astype(bf16), w_ref[OFF_A2:OFF_A2 + 128, 0:64],
                         preferred_element_type=f32)
                 + b_ref[:, BO_AC2:BO_AC2 + 64])                    # (B, 64)
    out_ref[...] = (jnp.dot(h.astype(bf16), w_ref[OFF_A3:OFF_A3 + 64, 0:A1],
                            preferred_element_type=f32)
                    + b_ref[:, BO_AC3:BO_AC3 + A1])                 # (B, A+1)


# ----------------------------------------------------------------------------
# Wrapper glue: nested im2col patches with fused validity column
# ----------------------------------------------------------------------------
def _conv_tap_patches(image):
    """Nested im2col: for each conv2 output position and each of its 9 taps,
    the conv1 im2col patch (36 values, order (ci,ki1,kj1)) plus a validity
    flag (0 on conv2's zero-padding ring).  Rows ordered (oh2, ow2, b);
    columns ordered tap-major; zero-padded to K1P columns."""
    B, C, H, W = image.shape
    OH1, OW1 = (H - 1) // 2 + 1, (W - 1) // 2 + 1
    OH2, OW2 = (OH1 - 1) // 2 + 1, (OW1 - 1) // 2 + 1

    # conv1 im2col over its full output grid
    xp = jnp.pad(image, ((0, 0), (0, 0), (1, 1), (1, 1)))
    cols = [xp[:, :, ki:ki + 2 * OH1:2, kj:kj + 2 * OW1:2]
            for ki in range(3) for kj in range(3)]          # each (B,C,OH1,OW1)
    p = jnp.stack(cols, axis=2)                             # (B, C, 9, OH1, OW1)
    p = p.transpose(0, 3, 4, 1, 2).reshape(B, OH1, OW1, C * 9)
    p = jnp.concatenate([p, jnp.ones((B, OH1, OW1, 1), p.dtype)], axis=-1)

    # conv2 tap gather over the (padded) conv1 output grid
    pp = jnp.pad(p, ((0, 0), (1, 1), (1, 1), (0, 0)))
    taps = [pp[:, ki:ki + 2 * OH2:2, kj:kj + 2 * OW2:2, :]
            for ki in range(3) for kj in range(3)]          # each (B,OH2,OW2,37)
    q = jnp.stack(taps, axis=3)                             # (B, OH2, OW2, 9, 37)
    q = q.transpose(1, 2, 0, 3, 4).reshape(OH2 * OW2 * B, 9 * TAP_W)
    q = jnp.pad(q, ((0, 0), (0, K1P - 9 * TAP_W)))          # K -> K1P
    return q.astype(jnp.bfloat16)


# ----------------------------------------------------------------------------
# Parameters: PyTorch-layout init + one-time kernel-layout preparation
# ----------------------------------------------------------------------------
def init_params(key):
    """Parameters in the layout the PyTorch nn.Module would hold them."""
    ks = jax.random.split(key, 18)
    s = 0.05

    def w(k, shape):
        return jax.random.normal(k, shape, jnp.float32) * s

    C = IMAGE_DIM[0]
    return {
        "conv1_w": w(ks[0], (32, C, 3, 3)),   "conv1_b": w(ks[1], (32,)),
        "conv2_w": w(ks[2], (64, 32, 3, 3)),  "conv2_b": w(ks[3], (64,)),
        "fc_w": w(ks[4], (256, FLAT_DIM)),    "fc_b": w(ks[5], (256,)),
        "a1_w": w(ks[6], (64, STATE_DIM + 256)),  "a1_b": w(ks[7], (64,)),
        "a2_w": w(ks[8], (32, 64)),               "a2_b": w(ks[9], (32,)),
        "a3_w": w(ks[10], (ACTION_DIM, 32)),      "a3_b": w(ks[11], (ACTION_DIM,)),
        "c1_w": w(ks[12], (64, STATE_DIM + 256)), "c1_b": w(ks[13], (64,)),
        "c2_w": w(ks[14], (32, 64)),              "c2_b": w(ks[15], (32,)),
        "c3_w": w(ks[16], (1, 32)),               "c3_b": w(ks[17], (1,)),
        "log_std": jnp.zeros((1, ACTION_DIM), jnp.float32),
    }


def prepare_params(p):
    """One-time layout plumbing: pack ALL weights into one bf16 slab and ALL
    biases into one f32 array, in the layouts the kernel slices statically."""
    bf16 = jnp.bfloat16
    C, H, W = IMAGE_DIM
    OH2, OW2 = H // 4, W // 4
    S = OH2 * OW2

    # conv1 block [(Cin*9, 32) weight ; (1, 32) bias], repeated block-diagonally
    w1 = p["conv1_w"].reshape(32, C * 9).T                          # (36, 32)
    w1aug_blk = jnp.concatenate([w1, p["conv1_b"][None, :]], axis=0)  # (37, 32)
    w1aug = jnp.kron(jnp.eye(9, dtype=jnp.float32), w1aug_blk)       # (333, 288)

    # conv2: (64, 32, 3, 3) -> (288, 64), rows ordered (tap, cin)
    w2pack = p["conv2_w"].transpose(2, 3, 1, 0).reshape(9 * 32, 64)

    # fc: PyTorch weight acts on an NCHW flatten (index c*S + s); regroup to
    # rows ordered (s, c) to match the kernel's (B, S*64) flatten.
    fc_w = (p["fc_w"].reshape(256, 64, OH2, OW2)
            .transpose(2, 3, 1, 0).reshape(S * 64, 256))

    # actor/critic layer 1: concat along outputs (lane-dense N=128), split
    # along inputs (state | image) so the kernel needs no concatenation.
    a1, c1 = p["a1_w"].T, p["c1_w"].T                               # (273, 64) each
    ac1_ws = jnp.concatenate([a1[:STATE_DIM], c1[:STATE_DIM]], axis=1)  # (17, 128)
    ac1_wi = jnp.concatenate([a1[STATE_DIM:], c1[STATE_DIM:]], axis=1)  # (256, 128)

    # layers 2/3: block-diagonal (actor block | critic block)
    ac2_w = jnp.zeros((128, 64), jnp.float32)
    ac2_w = ac2_w.at[:64, :32].set(p["a2_w"].T).at[64:, 32:].set(p["c2_w"].T)
    ac3_w = jnp.zeros((64, ACTION_DIM + 1), jnp.float32)
    ac3_w = (ac3_w.at[:32, :ACTION_DIM].set(p["a3_w"].T)
                  .at[32:, ACTION_DIM:].set(p["c3_w"].T))

    # ---- single bf16 weight slab ----
    slab = jnp.zeros((SLAB_ROWS, SLAB_COLS), jnp.float32)
    slab = slab.at[OFF_W1:OFF_W1 + K1, :].set(w1aug)
    slab = slab.at[OFF_W2:OFF_W2 + 288, :64].set(w2pack)
    slab = slab.at[OFF_FC:OFF_FC + FLAT_DIM, :256].set(fc_w)
    slab = slab.at[OFF_A1S:OFF_A1S + STATE_DIM, :128].set(ac1_ws)
    slab = slab.at[OFF_A1I:OFF_A1I + 256, :128].set(ac1_wi)
    slab = slab.at[OFF_A2:OFF_A2 + 128, :64].set(ac2_w)
    slab = slab.at[OFF_A3:OFF_A3 + 64, :ACTION_DIM + 1].set(ac3_w)

    # ---- single f32 bias array ----
    bias = jnp.zeros((1, BIAS_COLS), jnp.float32)
    bias = bias.at[0, BO_C2:BO_C2 + 64].set(p["conv2_b"])
    bias = bias.at[0, BO_FC:BO_FC + 256].set(p["fc_b"])
    bias = bias.at[0, BO_AC1:BO_AC1 + 128].set(
        jnp.concatenate([p["a1_b"], p["c1_b"]]))
    bias = bias.at[0, BO_AC2:BO_AC2 + 64].set(
        jnp.concatenate([p["a2_b"], p["c2_b"]]))
    bias = bias.at[0, BO_AC3:BO_AC3 + ACTION_DIM + 1].set(
        jnp.concatenate([p["a3_b"], p["c3_b"]]))

    return {
        "weights": slab.astype(bf16),
        "biases": bias,
        "std": jnp.exp(p["log_std"]),      # exp(log_std): constant, kept out of the kernel
    }


# ----------------------------------------------------------------------------
# Forward pass (mirrors Policy.forward)
# ----------------------------------------------------------------------------
def policy_forward(prepped, state, image):
    """Returns (mean, cov_diag, value)."""
    # TODO(synk): torch.distributions.MultivariateNormal has no Pallas
    # equivalent; we return (mean, cov_diag=exp(log_std), value) instead.
    image = image.reshape(-1, *IMAGE_DIM)            # image.view(-1, *image_dim)
    batch_size = image.shape[0]

    patches = _conv_tap_patches(image)

    if state.ndim == 1:                              # unsqueeze + repeat
        state = jnp.broadcast_to(state[None, :], (batch_size, state.shape[0]))
    state = state.astype(jnp.float32)

    flops = 2 * (S_POS * batch_size * K1P * 288
                 + S_POS * batch_size * 288 * 64
                 + batch_size * FLAT_DIM * 256
                 + batch_size * (STATE_DIM + 256) * 128
                 + batch_size * 128 * 64
                 + batch_size * 64 * (ACTION_DIM + 1))
    bytes_accessed = (patches.size * 2 + state.size * 4
                      + SLAB_ROWS * SLAB_COLS * 2 + BIAS_COLS * 4
                      + batch_size * (ACTION_DIM + 1) * 4)
    transcendentals = batch_size * (128 + 64)

    out = pl.pallas_call(
        _policy_fused_kernel,
        out_shape=jax.ShapeDtypeStruct((batch_size, ACTION_DIM + 1), jnp.float32),
        scratch_shapes=[pltpu.VMEM((batch_size, S_POS * 64), jnp.float32)],
        cost_estimate=pl.CostEstimate(flops=flops,
                                      transcendentals=transcendentals,
                                      bytes_accessed=bytes_accessed),
    )(patches, state, prepped["weights"], prepped["biases"])

    mean = out[:, :ACTION_DIM]
    value = out[:, ACTION_DIM:]
    cov_diag = jnp.broadcast_to(prepped["std"], (batch_size, ACTION_DIM))
    return mean, cov_diag, value


# ----------------------------------------------------------------------------
# Pure-JAX f32 reference (mirrors the PyTorch module exactly)
# ----------------------------------------------------------------------------
def reference_forward(params, state, image):
    image = image.reshape(-1, *IMAGE_DIM)
    B = image.shape[0]

    def conv(x, w, b):
        y = jax.lax.conv_general_dilated(
            x, w, window_strides=(2, 2), padding=((1, 1), (1, 1)),
            dimension_numbers=("NCHW", "OIHW", "NCHW"))
        return jax.nn.relu(y + b[None, :, None, None])

    h = conv(image, params["conv1_w"], params["conv1_b"])
    h = conv(h, params["conv2_w"], params["conv2_b"])
    h = h.reshape(B, -1)                                   # NCHW flatten
    img = jax.nn.relu(h @ params["fc_w"].T + params["fc_b"])

    if state.ndim == 1:
        state = jnp.broadcast_to(state[None, :], (B, state.shape[0]))
    x = jnp.concatenate([state, img], axis=1)

    a = jnp.tanh(x @ params["a1_w"].T + params["a1_b"])
    a = jnp.tanh(a @ params["a2_w"].T + params["a2_b"])
    mean = a @ params["a3_w"].T + params["a3_b"]

    c = jnp.tanh(x @ params["c1_w"].T + params["c1_b"])
    c = jnp.tanh(c @ params["c2_w"].T + params["c2_b"])
    value = c @ params["c3_w"].T + params["c3_b"]

    std = jnp.broadcast_to(jnp.exp(params["log_std"]), mean.shape)
    return mean, std, value


# ----------------------------------------------------------------------------
if __name__ == "__main__":
    key = jax.random.PRNGKey(0)
    kp, ks, ki = jax.random.split(key, 3)

    params = init_params(kp)
    prepped = prepare_params(params)

    # 1-D state exercises the unsqueeze+repeat branch
    state = jax.random.normal(ks, (STATE_DIM,), jnp.float32)
    image = jax.random.normal(ki, (BATCH, *IMAGE_DIM), jnp.float32)

    fwd = jax.jit(policy_forward)
    mean, cov_diag, value = fwd(prepped, state, image)
    jax.block_until_ready((mean, cov_diag, value))

    assert mean.shape == (BATCH, ACTION_DIM)
    assert cov_diag.shape == (BATCH, ACTION_DIM)
    assert value.shape == (BATCH, 1)
    assert bool(jnp.all(jnp.isfinite(mean))) and bool(jnp.all(jnp.isfinite(value)))

    # cross-check the fused bf16 kernel against the pure-JAX f32 reference
    ref_mean, ref_cov, ref_value = reference_forward(params, state, image)
    np.testing.assert_allclose(np.asarray(mean), np.asarray(ref_mean),
                               rtol=5e-2, atol=1e-2)
    np.testing.assert_allclose(np.asarray(value), np.asarray(ref_value),
                               rtol=5e-2, atol=1e-2)
    np.testing.assert_allclose(np.asarray(cov_diag), np.asarray(ref_cov),
                               rtol=1e-5, atol=1e-5)

    print("KERNEL_OK")
</pallas_src>

<mosaic_0001>
module attributes {stable_mosaic.version = 11 : i64} {
  func.func @_policy_fused_kernel(%arg0: memref<32x336xbf16, #tpu.memory_space<vmem>>, %arg1: memref<2x17xf32, #tpu.memory_space<vmem>>, %arg2: memref<2120x288xbf16, #tpu.memory_space<vmem>>, %arg3: memref<1x768xf32, #tpu.memory_space<vmem>>, %arg4: memref<2x8xf32, #tpu.memory_space<vmem>>, %arg5: memref<2x1024xf32, #tpu.memory_space<vmem>>) attributes {dimension_semantics = [], scalar_prefetch = 0 : i64, scratch_operands = 1 : i64, tpu.core_type = #tpu.core_type<tc>} {
    %c0 = arith.constant 0 : index
    %c0_0 = arith.constant 0 : index
    %0 = vector.load %arg0[%c0, %c0_0] : memref<32x336xbf16, #tpu.memory_space<vmem>>, vector<32x336xbf16>
    %c0_1 = arith.constant 0 : index
    %c0_2 = arith.constant 0 : index
    %1 = vector.load %arg2[%c0_1, %c0_2] : memref<2120x288xbf16, #tpu.memory_space<vmem>>, vector<336x288xbf16>
    %cst = arith.constant dense<0.000000e+00> : vector<32x288xf32>
    %2 = tpu.matmul %0, %1, %cst {dimension_numbers = #tpu.dot_dimension_numbers<[1], [0], [0], [1], [0, 0, 1, 1], [], []>} : vector<32x336xbf16>, vector<336x288xbf16>, vector<32x288xf32> -> vector<32x288xf32>
    %cst_3 = arith.constant 0.000000e+00 : f32
    %3 = vector.broadcast %cst_3 : f32 to vector<32x288xf32>
    %4 = arith.maximumf %2, %3 : vector<32x288xf32>
    %5 = arith.truncf %4 : vector<32x288xf32> to vector<32x288xbf16>
    %c336 = arith.constant 336 : index
    %c0_4 = arith.constant 0 : index
    %6 = vector.load %arg2[%c336, %c0_4] : memref<2120x288xbf16, #tpu.memory_space<vmem>>, vector<288x64xbf16>
    %cst_5 = arith.constant dense<0.000000e+00> : vector<32x64xf32>
    %7 = tpu.matmul %5, %6, %cst_5 {dimension_numbers = #tpu.dot_dimension_numbers<[1], [0], [0], [1], [0, 0, 1, 1], [], []>} : vector<32x288xbf16>, vector<288x64xbf16>, vector<32x64xf32> -> vector<32x64xf32>
    %c0_6 = arith.constant 0 : index
    %c0_7 = arith.constant 0 : index
    %8 = vector.load %arg3[%c0_6, %c0_7] : memref<1x768xf32, #tpu.memory_space<vmem>>, vector<1x64xf32>
    %9 = vector.broadcast %8 : vector<1x64xf32> to vector<32x64xf32>
    %10 = arith.addf %7, %9 : vector<32x64xf32>
    %cst_8 = arith.constant 0.000000e+00 : f32
    %11 = vector.broadcast %cst_8 : f32 to vector<32x64xf32>
    %12 = arith.maximumf %10, %11 : vector<32x64xf32>
    %13 = vector.extract_strided_slice %12 {offsets = [0, 0], sizes = [2, 64], strides = [1, 1]} : vector<32x64xf32> to vector<2x64xf32>
    %c0_9 = arith.constant 0 : index
    %c0_10 = arith.constant 0 : index
    %14 = vector.load %arg5[%c0_9, %c0_10] : memref<2x1024xf32, #tpu.memory_space<vmem>>, vector<2x64xf32>
    tpu.vector_store %arg5[%c0_9, %c0_10], %13 {strides = array<i32>} : memref<2x1024xf32, #tpu.memory_space<vmem>>, vector<2x64xf32>,
    %15 = vector.extract_strided_slice %12 {offsets = [2, 0], sizes = [2, 64], strides = [1, 1]} : vector<32x64xf32> to vector<2x64xf32>
    %c0_11 = arith.constant 0 : index
    %c64 = arith.constant 64 : index
    %16 = vector.load %arg5[%c0_11, %c64] : memref<2x1024xf32, #tpu.memory_space<vmem>>, vector<2x64xf32>
    tpu.vector_store %arg5[%c0_11, %c64], %15 {strides = array<i32>} : memref<2x1024xf32, #tpu.memory_space<vmem>>, vector<2x64xf32>,
    %17 = vector.extract_strided_slice %12 {offsets = [4, 0], sizes = [2, 64], strides = [1, 1]} : vector<32x64xf32> to vector<2x64xf32>
    %c0_12 = arith.constant 0 : index
    %c128 = arith.constant 128 : index
    %18 = vector.load %arg5[%c0_12, %c128] : memref<2x1024xf32, #tpu.memory_space<vmem>>, vector<2x64xf32>
    tpu.vector_store %arg5[%c0_12, %c128], %17 {strides = array<i32>} : memref<2x1024xf32, #tpu.memory_space<vmem>>, vector<2x64xf32>,
    %19 = vector.extract_strided_slice %12 {offsets = [6, 0], sizes = [2, 64], strides = [1, 1]} : vector<32x64xf32> to vector<2x64xf32>
    %c0_13 = arith.constant 0 : index
    %c192 = arith.constant 192 : index
    %20 = vector.load %arg5[%c0_13, %c192] : memref<2x1024xf32, #tpu.memory_space<vmem>>, vector<2x64xf32>
    tpu.vector_store %arg5[%c0_13, %c192], %19 {strides = array<i32>} : memref<2x1024xf32, #tpu.memory_space<vmem>>, vector<2x64xf32>,
    %21 = vector.extract_strided_slice %12 {offsets = [8, 0], sizes = [2, 64], strides = [1, 1]} : vector<32x64xf32> to vector<2x64xf32>
    %c0_14 = arith.constant 0 : index
    %c256 = arith.constant 256 : index
    %22 = vector.load %arg5[%c0_14, %c256] : memref<2x1024xf32, #tpu.memory_space<vmem>>, vector<2x64xf32>
    tpu.vector_store %arg5[%c0_14, %c256], %21 {strides = array<i32>} : memref<2x1024xf32, #tpu.memory_space<vmem>>, vector<2x64xf32>,
    %23 = vector.extract_strided_slice %12 {offsets = [10, 0], sizes = [2, 64], strides = [1, 1]} : vector<32x64xf32> to vector<2x64xf32>
    %c0_15 = arith.constant 0 : index
    %c320 = arith.constant 320 : index
    %24 = vector.load %arg5[%c0_15, %c320] : memref<2x1024xf32, #tpu.memory_space<vmem>>, vector<2x64xf32>
    tpu.vector_store %arg5[%c0_15, %c320], %23 {strides = array<i32>} : memref<2x1024xf32, #tpu.memory_space<vmem>>, vector<2x64xf32>,
    %25 = vector.extract_strided_slice %12 {offsets = [12, 0], sizes = [2, 64], strides = [1, 1]} : vector<32x64xf32> to vector<2x64xf32>
    %c0_16 = arith.constant 0 : index
    %c384 = arith.constant 384 : index
    %26 = vector.load %arg5[%c0_16, %c384] : memref<2x1024xf32, #tpu.memory_space<vmem>>, vector<2x64xf32>
    tpu.vector_store %arg5[%c0_16, %c384], %25 {strides = array<i32>} : memref<2x1024xf32, #tpu.memory_space<vmem>>, vector<2x64xf32>,
    %27 = vector.extract_strided_slice %12 {offsets = [14, 0], sizes = [2, 64], strides = [1, 1]} : vector<32x64xf32> to vector<2x64xf32>
    %c0_17 = arith.constant 0 : index
    %c448 = arith.constant 448 : index
    %28 = vector.load %arg5[%c0_17, %c448] : memref<2x1024xf32, #tpu.memory_space<vmem>>, vector<2x64xf32>
    tpu.vector_store %arg5[%c0_17, %c448], %27 {strides = array<i32>} : memref<2x1024xf32, #tpu.memory_space<vmem>>, vector<2x64xf32>,
    %29 = vector.extract_strided_slice %12 {offsets = [16, 0], sizes = [2, 64], strides = [1, 1]} : vector<32x64xf32> to vector<2x64xf32>
    %c0_18 = arith.constant 0 : index
    %c512 = arith.constant 512 : index
    %30 = vector.load %arg5[%c0_18, %c512] : memref<2x1024xf32, #tpu.memory_space<vmem>>, vector<2x64xf32>
    tpu.vector_store %arg5[%c0_18, %c512], %29 {strides = array<i32>} : memref<2x1024xf32, #tpu.memory_space<vmem>>, vector<2x64xf32>,
    %31 = vector.extract_strided_slice %12 {offsets = [18, 0], sizes = [2, 64], strides = [1, 1]} : vector<32x64xf32> to vector<2x64xf32>
    %c0_19 = arith.constant 0 : index
    %c576 = arith.constant 576 : index
    %32 = vector.load %arg5[%c0_19, %c576] : memref<2x1024xf32, #tpu.memory_space<vmem>>, vector<2x64xf32>
    tpu.vector_store %arg5[%c0_19, %c576], %31 {strides = array<i32>} : memref<2x1024xf32, #tpu.memory_space<vmem>>, vector<2x64xf32>,
    %33 = vector.extract_strided_slice %12 {offsets = [20, 0], sizes = [2, 64], strides = [1, 1]} : vector<32x64xf32> to vector<2x64xf32>
    %c0_20 = arith.constant 0 : index
    %c640 = arith.constant 640 : index
    %34 = vector.load %arg5[%c0_20, %c640] : memref<2x1024xf32, #tpu.memory_space<vmem>>, vector<2x64xf32>
    tpu.vector_store %arg5[%c0_20, %c640], %33 {strides = array<i32>} : memref<2x1024xf32, #tpu.memory_space<vmem>>, vector<2x64xf32>,
    %35 = vector.extract_strided_slice %12 {offsets = [22, 0], sizes = [2, 64], strides = [1, 1]} : vector<32x64xf32> to vector<2x64xf32>
    %c0_21 = arith.constant 0 : index
    %c704 = arith.constant 704 : index
    %36 = vector.load %arg5[%c0_21, %c704] : memref<2x1024xf32, #tpu.memory_space<vmem>>, vector<2x64xf32>
    tpu.vector_store %arg5[%c0_21, %c704], %35 {strides = array<i32>} : memref<2x1024xf32, #tpu.memory_space<vmem>>, vector<2x64xf32>,
    %37 = vector.extract_strided_slice %12 {offsets = [24, 0], sizes = [2, 64], strides = [1, 1]} : vector<32x64xf32> to vector<2x64xf32>
    %c0_22 = arith.constant 0 : index
    %c768 = arith.constant 768 : index
    %38 = vector.load %arg5[%c0_22, %c768] : memref<2x1024xf32, #tpu.memory_space<vmem>>, vector<2x64xf32>
    tpu.vector_store %arg5[%c0_22, %c768], %37 {strides = array<i32>} : memref<2x1024xf32, #tpu.memory_space<vmem>>, vector<2x64xf32>,
    %39 = vector.extract_strided_slice %12 {offsets = [26, 0], sizes = [2, 64], strides = [1, 1]} : vector<32x64xf32> to vector<2x64xf32>
    %c0_23 = arith.constant 0 : index
    %c832 = arith.constant 832 : index
    %40 = vector.load %arg5[%c0_23, %c832] : memref<2x1024xf32, #tpu.memory_space<vmem>>, vector<2x64xf32>
    tpu.vector_store %arg5[%c0_23, %c832], %39 {strides = array<i32>} : memref<2x1024xf32, #tpu.memory_space<vmem>>, vector<2x64xf32>,
    %41 = vector.extract_strided_slice %12 {offsets = [28, 0], sizes = [2, 64], strides = [1, 1]} : vector<32x64xf32> to vector<2x64xf32>
    %c0_24 = arith.constant 0 : index
    %c896 = arith.constant 896 : index
    %42 = vector.load %arg5[%c0_24, %c896] : memref<2x1024xf32, #tpu.memory_space<vmem>>, vector<2x64xf32>
    tpu.vector_store %arg5[%c0_24, %c896], %41 {strides = array<i32>} : memref<2x1024xf32, #tpu.memory_space<vmem>>, vector<2x64xf32>,
    %43 = vector.extract_strided_slice %12 {offsets = [30, 0], sizes = [2, 64], strides = [1, 1]} : vector<32x64xf32> to vector<2x64xf32>
    %c0_25 = arith.constant 0 : index
    %c960 = arith.constant 960 : index
    %44 = vector.load %arg5[%c0_25, %c960] : memref<2x1024xf32, #tpu.memory_space<vmem>>, vector<2x64xf32>
    tpu.vector_store %arg5[%c0_25, %c960], %43 {strides = array<i32>} : memref<2x1024xf32, #tpu.memory_space<vmem>>, vector<2x64xf32>,
    %c0_26 = arith.constant 0 : index
    %c0_27 = arith.constant 0 : index
    %45 = vector.load %arg5[%c0_26, %c0_27] : memref<2x1024xf32, #tpu.memory_space<vmem>>, vector<2x1024xf32>
    %46 = arith.truncf %45 : vector<2x1024xf32> to vector<2x1024xbf16>
    %c624 = arith.constant 624 : index
    %c0_28 = arith.constant 0 : index
    %47 = vector.load %arg2[%c624, %c0_28] : memref<2120x288xbf16, #tpu.memory_space<vmem>>, vector<1024x256xbf16>
    %cst_29 = arith.constant dense<0.000000e+00> : vector<2x256xf32>
    %48 = tpu.matmul %46, %47, %cst_29 {dimension_numbers = #tpu.dot_dimension_numbers<[1], [0], [0], [1], [0, 0, 1, 1], [], []>} : vector<2x1024xbf16>, vector<1024x256xbf16>, vector<2x256xf32> -> vector<2x256xf32>
    %c0_30 = arith.constant 0 : index
    %c128_31 = arith.constant 128 : index
    %49 = vector.load %arg3[%c0_30, %c128_31] : memref<1x768xf32, #tpu.memory_space<vmem>>, vector<1x256xf32>
    %50 = vector.broadcast %49 : vector<1x256xf32> to vector<2x256xf32>
    %51 = arith.addf %48, %50 : vector<2x256xf32>
    %cst_32 = arith.constant 0.000000e+00 : f32
    %52 = vector.broadcast %cst_32 : f32 to vector<2x256xf32>
    %53 = arith.maximumf %51, %52 : vector<2x256xf32>
    %c0_33 = arith.constant 0 : index
    %c0_34 = arith.constant 0 : index
    %54 = vector.load %arg1[%c0_33, %c0_34] : memref<2x17xf32, #tpu.memory_space<vmem>>, vector<2x17xf32>
    %55 = arith.truncf %54 : vector<2x17xf32> to vector<2x17xbf16>
    %c1648 = arith.constant 1648 : index
    %c0_35 = arith.constant 0 : index
    %56 = vector.load %arg2[%c1648, %c0_35] : memref<2120x288xbf16, #tpu.memory_space<vmem>>, vector<17x128xbf16>
    %cst_36 = arith.constant dense<0.000000e+00> : vector<2x128xf32>
    %57 = tpu.matmul %55, %56, %cst_36 {dimension_numbers = #tpu.dot_dimension_numbers<[1], [0], [0], [1], [0, 0, 1, 1], [], []>} : vector<2x17xbf16>, vector<17x128xbf16>, vector<2x128xf32> -> vector<2x128xf32>
    %58 = arith.truncf %53 : vector<2x256xf32> to vector<2x256xbf16>
    %c1672 = arith.constant 1672 : index
    %c0_37 = arith.constant 0 : index
    %59 = vector.load %arg2[%c1672, %c0_37] : memref<2120x288xbf16, #tpu.memory_space<vmem>>, vector<256x128xbf16>
    %cst_38 = arith.constant dense<0.000000e+00> : vector<2x128xf32>
    %60 = tpu.matmul %58, %59, %cst_38 {dimension_numbers = #tpu.dot_dimension_numbers<[1], [0], [0], [1], [0, 0, 1, 1], [], []>} : vector<2x256xbf16>, vector<256x128xbf16>, vector<2x128xf32> -> vector<2x128xf32>
    %61 = arith.addf %57, %60 : vector<2x128xf32>
    %c0_39 = arith.constant 0 : index
    %c384_40 = arith.constant 384 : index
    %62 = vector.load %arg3[%c0_39, %c384_40] : memref<1x768xf32, #tpu.memory_space<vmem>>, vector<1x128xf32>
    %63 = vector.broadcast %62 : vector<1x128xf32> to vector<2x128xf32>
    %64 = arith.addf %61, %63 : vector<2x128xf32>
    %65 = math.tanh %64 : vector<2x128xf32>
    %66 = arith.truncf %65 : vector<2x128xf32> to vector<2x128xbf16>
    %c1928 = arith.constant 1928 : index
    %c0_41 = arith.constant 0 : index
    %67 = vector.load %arg2[%c1928, %c0_41] : memref<2120x288xbf16, #tpu.memory_space<vmem>>, vector<128x64xbf16>
    %cst_42 = arith.constant dense<0.000000e+00> : vector<2x64xf32>
    %68 = tpu.matmul %66, %67, %cst_42 {dimension_numbers = #tpu.dot_dimension_numbers<[1], [0], [0], [1], [0, 0, 1, 1], [], []>} : vector<2x128xbf16>, vector<128x64xbf16>, vector<2x64xf32> -> vector<2x64xf32>
    %c0_43 = arith.constant 0 : index
    %c512_44 = arith.constant 512 : index
    %69 = vector.load %arg3[%c0_43, %c512_44] : memref<1x768xf32, #tpu.memory_space<vmem>>, vector<1x64xf32>
    %70 = vector.broadcast %69 : vector<1x64xf32> to vector<2x64xf32>
    %71 = arith.addf %68, %70 : vector<2x64xf32>
    %72 = math.tanh %71 : vector<2x64xf32>
    %73 = arith.truncf %72 : vector<2x64xf32> to vector<2x64xbf16>
    %c2056 = arith.constant 2056 : index
    %c0_45 = arith.constant 0 : index
    %74 = vector.load %arg2[%c2056, %c0_45] : memref<2120x288xbf16, #tpu.memory_space<vmem>>, vector<64x8xbf16>
    %cst_46 = arith.constant dense<0.000000e+00> : vector<2x8xf32>
    %75 = tpu.matmul %73, %74, %cst_46 {dimension_numbers = #tpu.dot_dimension_numbers<[1], [0], [0], [1], [0, 0, 1, 1], [], []>} : vector<2x64xbf16>, vector<64x8xbf16>, vector<2x8xf32> -> vector<2x8xf32>
    %c0_47 = arith.constant 0 : index
    %c640_48 = arith.constant 640 : index
    %76 = vector.load %arg3[%c0_47, %c640_48] : memref<1x768xf32, #tpu.memory_space<vmem>>, vector<1x8xf32>
    %77 = vector.broadcast %76 : vector<1x8xf32> to vector<2x8xf32>
    %78 = arith.addf %75, %77 : vector<2x8xf32>
    %c0_49 = arith.constant 0 : index
    %c0_50 = arith.constant 0 : index
    %79 = vector.load %arg4[%c0_49, %c0_50] : memref<2x8xf32, #tpu.memory_space<vmem>>, vector<2x8xf32>
    tpu.vector_store %arg4[%c0_49, %c0_50], %78 {strides = array<i32>} : memref<2x8xf32, #tpu.memory_space<vmem>>, vector<2x8xf32>,
    return
  }
}

</mosaic_0001>

<llo_original>
// kernel: policy_forward.1
$region0: #{policy_forward.1}
  #allocation0 [shape = 'u32[]', space=smem, size = 0x4, offset = 0x4, fixed_abs, tag = 'smem constant byte address 0x4 - core index']
  #allocation1 [shape = 'u32[144,128]{1,0:T(1,128)}', space=vmem, size = 0x12000, scoped, tag = 'internal scratch']
  #allocation2 [shape = 'f32[2,1024]{1,0:T(2,128)}', space=vmem, size = 0x2000, scoped, tag = 'scratch operand']
  %s0 = inlined_call_operand.vmem [shape: bf16[32,336], index: 0, kind: input, shape index: {}]
  %s1 = inlined_call_operand.vmem [shape: f32[2,17], index: 1, kind: input, shape index: {}]
  %s2 = inlined_call_operand.vmem [shape: bf16[2120,288], index: 2, kind: input, shape index: {}]
  %s3 = inlined_call_operand.vmem [shape: f32[1,768], index: 3, kind: input, shape index: {}]
  %s4 = inlined_call_operand.vmem [shape: f32[2,8], index: 4, kind: output, shape index: {}]
  %s5 = sld [smem:[#allocation0]]
  $region26: #{policy_forward.1} parent=0
    _
  %s7 = ssub.s32 1, %s5
  %s8 = scalar_select 0, %s7, %s5
  // Predicated region
  $region2: #{policy_forward.1} parent=0 // pred_check
    _
  $region3: #{policy_forward.1} parent=0 // pred_check_branch
    %10 = sbr.rel (0) target = $region5
  $region4: #{policy_forward.1} parent=0 // pred_region
    _
  $region5: #{policy_forward.1} parent=0 // pred_fallthru
    _
  // Predicated region
  $region6: #{policy_forward.1} parent=0 // pred_check
    _
  $region7: #{policy_forward.1} parent=0 // pred_check_branch
    %12 = sbr.rel (0) target = $region9
  $region8: #{policy_forward.1} parent=0 // pred_region
    _
  $region9: #{policy_forward.1} parent=0 // pred_fallthru
    _
  // Predicated region
  $region10: #{policy_forward.1} parent=0 // pred_check
    _
  $region11: #{policy_forward.1} parent=0 // pred_check_branch
    %14 = sbr.rel (0) target = $region13
  $region12: #{policy_forward.1} parent=0 // pred_region
    _
  $region13: #{policy_forward.1} parent=0 // pred_fallthru
    _
  // Predicated region
  $region14: #{policy_forward.1} parent=0 // pred_check
    _
  $region15: #{policy_forward.1} parent=0 // pred_check_branch
    %16 = sbr.rel (0) target = $region17
  $region16: #{policy_forward.1} parent=0 // pred_region
    _
  $region17: #{policy_forward.1} parent=0 // pred_fallthru
    _
  %v18 = vld [vmem:[%s0] sm:$0xff]
  %v19 = vld [vmem:[%s0 + $0x8] sm:$0xf]
  %v20 = vld [vmem:[%s0 + $0xc] sm:$0xff]
  %v21 = vld [vmem:[%s0 + $0x14] sm:$0xf]
  %v22 = vld [vmem:[%s0 + $0x18] sm:$0xff]
  %v23 = vld [vmem:[%s0 + $0x20] sm:$0xf]
  %v24 = vld [vmem:[%s0 + $0x24] sm:$0xff]
  %v25 = vld [vmem:[%s0 + $0x2c] sm:$0xf]
  %v26 = vld [vmem:[%s2] sm:$0xff]
  %v27 = vld [vmem:[%s2 + $0x8] sm:$0xf]
  %v28 = vld [vmem:[%s2 + $0xc] sm:$0xff]
  %v29 = vld [vmem:[%s2 + $0x14] sm:$0xf]
  %v30 = vld [vmem:[%s2 + $0x18] sm:$0xff]
  %v31 = vld [vmem:[%s2 + $0x20] sm:$0xf]
  %v32 = vld [vmem:[%s2 + $0x24] sm:$0xff]
  %v33 = vld [vmem:[%s2 + $0x2c] sm:$0xf]
  %v34 = vld [vmem:[%s2 + $0x30] sm:$0xff]
  %v35 = vld [vmem:[%s2 + $0x38] sm:$0xf]
  %v36 = vld [vmem:[%s2 + $0x3c] sm:$0xff]
  %v37 = vld [vmem:[%s2 + $0x44] sm:$0xf]
  %v38 = vld [vmem:[%s2 + $0x48] sm:$0xff]
  %v39 = vld [vmem:[%s2 + $0x50] sm:$0xf]
  %v40 = vld [vmem:[%s2 + $0x54] sm:$0xff]
  %v41 = vld [vmem:[%s2 + $0x5c] sm:$0xf]
  %v42 = vld [vmem:[%s2 + $0x60] sm:$0xff]
  %v43 = vld [vmem:[%s2 + $0x68] sm:$0xf]
  %v44 = vld [vmem:[%s2 + $0x6c] sm:$0xff]
  %v45 = vld [vmem:[%s2 + $0x74] sm:$0xf]
  %v46 = vld [vmem:[%s2 + $0x78] sm:$0xff]
  %v47 = vld [vmem:[%s2 + $0x80] sm:$0xf]
  %v48 = vld [vmem:[%s2 + $0x84] sm:$0xff]
  %v49 = vld [vmem:[%s2 + $0x8c] sm:$0xf]
  %v50 = vld [vmem:[%s2 + $0x90] sm:$0xff]
  %v51 = vld [vmem:[%s2 + $0x98] sm:$0xf]
  %v52 = vld [vmem:[%s2 + $0x9c] sm:$0xff]
  %v53 = vld [vmem:[%s2 + $0xa4] sm:$0xf]
  %v54 = vld [vmem:[%s2 + $0xa8] sm:$0xff]
  %v55 = vld [vmem:[%s2 + $0xb0] sm:$0xf]
  %v56 = vld [vmem:[%s2 + $0xb4] sm:$0xff]
  %v57 = vld [vmem:[%s2 + $0xbc] sm:$0xf]
  %v58 = vld [vmem:[%s2 + $0xc0] sm:$0xff]
  %v59 = vld [vmem:[%s2 + $0xc8] sm:$0xf]
  %v60 = vld [vmem:[%s2 + $0xcc] sm:$0xff]
  %v61 = vld [vmem:[%s2 + $0xd4] sm:$0xf]
  %v62 = vld [vmem:[%s2 + $0xd8] sm:$0xff]
  %v63 = vld [vmem:[%s2 + $0xe0] sm:$0xf]
  %v64 = vld [vmem:[%s2 + $0xe4] sm:$0xff]
  %v65 = vld [vmem:[%s2 + $0xec] sm:$0xf]
  %v66 = vld [vmem:[%s2 + $0xf0] sm:$0xff]
  %v67 = vld [vmem:[%s2 + $0xf8] sm:$0xf]
  %v68 = vld [vmem:[%s2 + $0xfc] sm:$0xff]
  %v69 = vld [vmem:[%s2 + $0x104] sm:$0xf]
  %v70 = vld [vmem:[%s2 + $0x108] sm:$0xff]
  %v71 = vld [vmem:[%s2 + $0x110] sm:$0xf]
  %v72 = vld [vmem:[%s2 + $0x114] sm:$0xff]
  %v73 = vld [vmem:[%s2 + $0x11c] sm:$0xf]
  %v74 = vld [vmem:[%s2 + $0x120] sm:$0xff]
  %v75 = vld [vmem:[%s2 + $0x128] sm:$0xf]
  %v76 = vld [vmem:[%s2 + $0x12c] sm:$0xff]
  %v77 = vld [vmem:[%s2 + $0x134] sm:$0xf]
  %v78 = vld [vmem:[%s2 + $0x138] sm:$0xff]
  %v79 = vld [vmem:[%s2 + $0x140] sm:$0xf]
  %v80 = vld [vmem:[%s2 + $0x144] sm:$0xff]
  %v81 = vld [vmem:[%s2 + $0x14c] sm:$0xf]
  %v82 = vld [vmem:[%s2 + $0x150] sm:$0xff]
  %v83 = vld [vmem:[%s2 + $0x158] sm:$0xf]
  %v84 = vld [vmem:[%s2 + $0x15c] sm:$0xff]
  %v85 = vld [vmem:[%s2 + $0x164] sm:$0xf]
  %v86 = vld [vmem:[%s2 + $0x168] sm:$0xff]
  %v87 = vld [vmem:[%s2 + $0x170] sm:$0xf]
  %v88 = vld [vmem:[%s2 + $0x174] sm:$0xff]
  %v89 = vld [vmem:[%s2 + $0x17c] sm:$0xf]
  %v90 = vld [vmem:[%s2 + $0x180] sm:$0xff]
  %v91 = vld [vmem:[%s2 + $0x188] sm:$0xf]
  %v92 = vld [vmem:[%s2 + $0x18c] sm:$0xff]
  %v93 = vld [vmem:[%s2 + $0x194] sm:$0xf]
  %v94 = vld [vmem:[%s2 + $0x198] sm:$0xff]
  %v95 = vld [vmem:[%s2 + $0x1a0] sm:$0xf]
  %v96 = vld [vmem:[%s2 + $0x1a4] sm:$0xff]
  %v97 = vld [vmem:[%s2 + $0x1ac] sm:$0xf]
  %v98 = vld [vmem:[%s2 + $0x1b0] sm:$0xff]
  %v99 = vld [vmem:[%s2 + $0x1b8] sm:$0xf]
  %v100 = vld [vmem:[%s2 + $0x1bc] sm:$0xff]
  %v101 = vld [vmem:[%s2 + $0x1c4] sm:$0xf]
  %v102 = vld [vmem:[%s2 + $0x1c8] sm:$0xff]
  %v103 = vld [vmem:[%s2 + $0x1d0] sm:$0xf]
  %v104 = vld [vmem:[%s2 + $0x1d4] sm:$0xff]
  %v105 = vld [vmem:[%s2 + $0x1dc] sm:$0xf]
  %v106 = vld [vmem:[%s2 + $0x1e0] sm:$0xff]
  %v107 = vld [vmem:[%s2 + $0x1e8] sm:$0xf]
  %v108 = vld [vmem:[%s2 + $0x1ec] sm:$0xff]
  %v109 = vld [vmem:[%s2 + $0x1f4] sm:$0xf]
  %v118 = vunpack.c.l.b16 %v18
  %v119 = vunpack.c.h.b16 %v18
  %v120 = vunpack.c.l.b16 %v19
  %v121 = vunpack.c.l.b16 %v20
  %v122 = vunpack.c.h.b16 %v20
  %v123 = vunpack.c.l.b16 %v21
  %v124 = vunpack.c.l.b16 %v22
  %v125 = vunpack.c.h.b16 %v22
  %v126 = vunpack.c.l.b16 %v23
  %v127 = vunpack.c.l.b16 %v24
  %v128 = vunpack.c.h.b16 %v24
  %v129 = vunpack.c.l.b16 %v25
  %v130 = vpack.c.b16 %v121, %v118
  %v131 = vpack.c.b16 %v122, %v119
  %v132 = vpack.c.b16 %v123, %v120
  %v133 = vpack.c.b16 %v127, %v124
  %v134 = vpack.c.b16 %v128, %v125
  %v135 = vpack.c.b16 %v129, %v126
  %v224 = vunpack.c.l.b16 %v26
  %v225 = vunpack.c.h.b16 %v26
  %v226 = vunpack.c.l.b16 %v27
  %v227 = vunpack.c.l.b16 %v28
  %v228 = vunpack.c.h.b16 %v28
  %v229 = vunpack.c.l.b16 %v29
  %v230 = vunpack.c.l.b16 %v30
  %v231 = vunpack.c.h.b16 %v30
  %v232 = vunpack.c.l.b16 %v31
  %v233 = vunpack.c.l.b16 %v32
  %v234 = vunpack.c.h.b16 %v32
  %v235 = vunpack.c.l.b16 %v33
  %v236 = vunpack.c.l.b16 %v34
  %v237 = vunpack.c.h.b16 %v34
  %v238 = vunpack.c.l.b16 %v35
  %v239 = vunpack.c.l.b16 %v36
  %v240 = vunpack.c.h.b16 %v36
  %v241 = vunpack.c.l.b16 %v37
  %v242 = vunpack.c.l.b16 %v38
  %v243 = vunpack.c.h.b16 %v38
  %v244 = vunpack.c.l.b16 %v39
  %v245 = vunpack.c.l.b16 %v40
  %v246 = vunpack.c.h.b16 %v40
  %v247 = vunpack.c.l.b16 %v41
  %v248 = vunpack.c.l.b16 %v42
  %v249 = vunpack.c.h.b16 %v42
  %v250 = vunpack.c.l.b16 %v43
  %v251 = vunpack.c.l.b16 %v44
  %v252 = vunpack.c.h.b16 %v44
  %v253 = vunpack.c.l.b16 %v45
  %v254 = vunpack.c.l.b16 %v46
  %v255 = vunpack.c.h.b16 %v46
  %v256 = vunpack.c.l.b16 %v47
  %v257 = vunpack.c.l.b16 %v48
  %v258 = vunpack.c.h.b16 %v48
  %v259 = vunpack.c.l.b16 %v49
  %v260 = vunpack.c.l.b16 %v50
  %v261 = vunpack.c.h.b16 %v50
  %v262 = vunpack.c.l.b16 %v51
  %v263 = vunpack.c.l.b16 %v52
  %v264 = vunpack.c.h.b16 %v52
  %v265 = vunpack.c.l.b16 %v53
  %v266 = vunpack.c.l.b16 %v54
  %v267 = vunpack.c.h.b16 %v54
  %v268 = vunpack.c.l.b16 %v55
  %v269 = vunpack.c.l.b16 %v56
  %v270 = vunpack.c.h.b16 %v56
  %v271 = vunpack.c.l.b16 %v57
  %v272 = vunpack.c.l.b16 %v58
  %v273 = vunpack.c.h.b16 %v58
  %v274 = vunpack.c.l.b16 %v59
  %v275 = vunpack.c.l.b16 %v60
  %v276 = vunpack.c.h.b16 %v60
  %v277 = vunpack.c.l.b16 %v61
  %v278 = vunpack.c.l.b16 %v62
  %v279 = vunpack.c.h.b16 %v62
  %v280 = vunpack.c.l.b16 %v63
  %v281 = vunpack.c.l.b16 %v64
  %v282 = vunpack.c.h.b16 %v64
  %v283 = vunpack.c.l.b16 %v65
  %v284 = vunpack.c.l.b16 %v66
  %v285 = vunpack.c.h.b16 %v66
  %v286 = vunpack.c.l.b16 %v67
  %v287 = vunpack.c.l.b16 %v68
  %v288 = vunpack.c.h.b16 %v68
  %v289 = vunpack.c.l.b16 %v69
  %v290 = vunpack.c.l.b16 %v70
  %v291 = vunpack.c.h.b16 %v70
  %v292 = vunpack.c.l.b16 %v71
  %v293 = vunpack.c.l.b16 %v72
  %v294 = vunpack.c.h.b16 %v72
  %v295 = vunpack.c.l.b16 %v73
  %v296 = vunpack.c.l.b16 %v74
  %v297 = vunpack.c.h.b16 %v74
  %v298 = vunpack.c.l.b16 %v75
  %v299 = vunpack.c.l.b16 %v76
  %v300 = vunpack.c.h.b16 %v76
  %v301 = vunpack.c.l.b16 %v77
  %v302 = vunpack.c.l.b16 %v78
  %v303 = vunpack.c.h.b16 %v78
  %v304 = vunpack.c.l.b16 %v79
  %v305 = vunpack.c.l.b16 %v80
  %v306 = vunpack.c.h.b16 %v80
  %v307 = vunpack.c.l.b16 %v81
  %v308 = vunpack.c.l.b16 %v82
  %v309 = vunpack.c.h.b16 %v82
  %v310 = vunpack.c.l.b16 %v83
  %v311 = vunpack.c.l.b16 %v84
  %v312 = vunpack.c.h.b16 %v84
  %v313 = vunpack.c.l.b16 %v85
  %v314 = vunpack.c.l.b16 %v86
  %v315 = vunpack.c.h.b16 %v86
  %v316 = vunpack.c.l.b16 %v87
  %v317 = vunpack.c.l.b16 %v88
  %v318 = vunpack.c.h.b16 %v88
  %v319 = vunpack.c.l.b16 %v89
  %v320 = vunpack.c.l.b16 %v90
  %v321 = vunpack.c.h.b16 %v90
  %v322 = vunpack.c.l.b16 %v91
  %v323 = vunpack.c.l.b16 %v92
  %v324 = vunpack.c.h.b16 %v92
  %v325 = vunpack.c.l.b16 %v93
  %v326 = vunpack.c.l.b16 %v94
  %v327 = vunpack.c.h.b16 %v94
  %v328 = vunpack.c.l.b16 %v95
  %v329 = vunpack.c.l.b16 %v96
  %v330 = vunpack.c.h.b16 %v96
  %v331 = vunpack.c.l.b16 %v97
  %v332 = vunpack.c.l.b16 %v98
  %v333 = vunpack.c.h.b16 %v98
  %v334 = vunpack.c.l.b16 %v99
  %v335 = vunpack.c.l.b16 %v100
  %v336 = vunpack.c.h.b16 %v100
  %v337 = vunpack.c.l.b16 %v101
  %v338 = vunpack.c.l.b16 %v102
  %v339 = vunpack.c.h.b16 %v102
  %v340 = vunpack.c.l.b16 %v103
  %v341 = vunpack.c.l.b16 %v104
  %v342 = vunpack.c.h.b16 %v104
  %v343 = vunpack.c.l.b16 %v105
  %v344 = vunpack.c.l.b16 %v106
  %v345 = vunpack.c.h.b16 %v106
  %v346 = vunpack.c.l.b16 %v107
  %v347 = vunpack.c.l.b16 %v108
  %v348 = vunpack.c.h.b16 %v108
  %v349 = vunpack.c.l.b16 %v109
  %v350 = vpack.c.b16 %v227, %v224
  %v351 = vpack.c.b16 %v228, %v225
  %v352 = vpack.c.b16 %v229, %v226
  %v353 = vpack.c.b16 %v233, %v230
  %v354 = vpack.c.b16 %v234, %v231
  %v355 = vpack.c.b16 %v235, %v232
  %v356 = vpack.c.b16 %v239, %v236
  %v357 = vpack.c.b16 %v240, %v237
  %v358 = vpack.c.b16 %v241, %v238
  %v359 = vpack.c.b16 %v245, %v242
  %v360 = vpack.c.b16 %v246, %v243
  %v361 = vpack.c.b16 %v247, %v244
  %v362 = vpack.c.b16 %v251, %v248
  %v363 = vpack.c.b16 %v252, %v249
  %v364 = vpack.c.b16 %v253, %v250
  %v365 = vpack.c.b16 %v257, %v254
  %v366 = vpack.c.b16 %v258, %v255
  %v367 = vpack.c.b16 %v259, %v256
  %v368 = vpack.c.b16 %v263, %v260
  %v369 = vpack.c.b16 %v264, %v261
  %v370 = vpack.c.b16 %v265, %v262
  %v371 = vpack.c.b16 %v269, %v266
  %v372 = vpack.c.b16 %v270, %v267
  %v373 = vpack.c.b16 %v271, %v268
  %v374 = vpack.c.b16 %v275, %v272
  %v375 = vpack.c.b16 %v276, %v273
  %v376 = vpack.c.b16 %v277, %v274
  %v377 = vpack.c.b16 %v281, %v278
  %v378 = vpack.c.b16 %v282, %v279
  %v379 = vpack.c.b16 %v283, %v280
  %v380 = vpack.c.b16 %v287, %v284
  %v381 = vpack.c.b16 %v288, %v285
  %v382 = vpack.c.b16 %v289, %v286
  %v383 = vpack.c.b16 %v293, %v290
  %v384 = vpack.c.b16 %v294, %v291
  %v385 = vpack.c.b16 %v295, %v292
  %v386 = vpack.c.b16 %v299, %v296
  %v387 = vpack.c.b16 %v300, %v297
  %v388 = vpack.c.b16 %v301, %v298
  %v389 = vpack.c.b16 %v305, %v302
  %v390 = vpack.c.b16 %v306, %v303
  %v391 = vpack.c.b16 %v307, %v304
  %v392 = vpack.c.b16 %v311, %v308
  %v393 = vpack.c.b16 %v312, %v309
  %v394 = vpack.c.b16 %v313, %v310
  %v395 = vpack.c.b16 %v317, %v314
  %v396 = vpack.c.b16 %v318, %v315
  %v397 = vpack.c.b16 %v319, %v316
  %v398 = vpack.c.b16 %v323, %v320
  %v399 = vpack.c.b16 %v324, %v321
  %v400 = vpack.c.b16 %v325, %v322
  %v401 = vpack.c.b16 %v329, %v326
  %v402 = vpack.c.b16 %v330, %v327
  %v403 = vpack.c.b16 %v331, %v328
  %v404 = vpack.c.b16 %v335, %v332
  %v405 = vpack.c.b16 %v336, %v333
  %v406 = vpack.c.b16 %v337, %v334
  %v407 = vpack.c.b16 %v341, %v338
  %v408 = vpack.c.b16 %v342, %v339
  %v409 = vpack.c.b16 %v343, %v340
  %v410 = vpack.c.b16 %v347, %v344
  %v411 = vpack.c.b16 %v348, %v345
  %v412 = vpack.c.b16 %v349, %v346
  %vm476 = vcmask 654336
  %v478 = vsel %vm476, %v132, 0
  %v481 = vsel %vm476, %v135, 0
  %483 = vmatprep.subr.bf16.mxu0 %v351
  %484 = vmatpush1.bf16.msra.mxu0 %v350
  %485 = vmatprep.subr.bf16.mxu0 %v354
  %486 = vmatpush1.bf16.msra.mxu0 %v353
  %487 = vmatprep.subr.bf16.mxu0 %v357
  %488 = vmatpush1.bf16.msra.mxu0 %v356
  %489 = vmatprep.subr.bf16.mxu0 %v360
  %490 = vmatpush1.bf16.msra.mxu0 %v359
  %491 = vmatprep.subr.bf16.mxu0 %v363
  %492 = vmatpush1.bf16.msra.mxu0 %v362
  %493 = vmatprep.subr.bf16.mxu0 %v366
  %494 = vmatpush1.bf16.msra.mxu0 %v365
  %495 = vmatprep.subr.bf16.mxu0 %v369
  %496 = vmatpush1.bf16.msra.mxu0 %v368
  %497 = vmatprep.subr.bf16.mxu0 %v372
  %498 = vmatpush1.bf16.msra.mxu0 %v371
  %499 = vmatprep.subr.bf16.mxu0 %v375
  %500 = vmatpush1.bf16.msra.mxu0 %v374
  %501 = vmatprep.subr.bf16.mxu0 %v378
  %502 = vmatpush1.bf16.msra.mxu0 %v377
  %503 = vmatprep.subr.bf16.mxu0 %v381
  %504 = vmatpush1.bf16.msra.mxu0 %v380
  %505 = vmatprep.subr.bf16.mxu0 %v384
  %506 = vmatpush1.bf16.msra.mxu0 %v383
  %507 = vmatprep.subr.bf16.mxu0 %v387
  %508 = vmatpush1.bf16.msra.mxu0 %v386
  %509 = vmatprep.subr.bf16.mxu0 %v390
  %510 = vmatpush1.bf16.msra.mxu0 %v389
  %511 = vmatprep.subr.bf16.mxu0 %v393
  %512 = vmatpush1.bf16.msra.mxu0 %v392
  %513 = vmatprep.subr.bf16.mxu0 %v396
  %514 = vmatpush1.bf16.msra.mxu0 %v395
  %515 = vmatprep.mubr.bf16.mxu0 %v131
  %516 = vmatmul.mubr.bf16.gmra.mrb[0].mxu0 %v130
  %v517 = vpop.f32.mrb[0].mxu0
  %v518 = vadd.f32 0.0, %v517
  %v519 = vpop.f32.mrb[0].mxu0
  %v520 = vadd.f32 0.0, %v519
  %v521 = vpop.f32.mrb[0].mxu0
  %v522 = vadd.f32 0.0, %v521
  %v523 = vpop.f32.mrb[0].mxu0
  %v524 = vadd.f32 0.0, %v523
  %525 = vmatprep.mubr.bf16.mxu0 %v134
  %526 = vmatmul.mubr.bf16.gmra.mrb[0].mxu0 %v133
  %v527 = vpop.f32.mrb[0].mxu0
  %v528 = vadd.f32 0.0, %v527
  %v529 = vpop.f32.mrb[0].mxu0
  %v530 = vadd.f32 0.0, %v529
  %v531 = vpop.f32.mrb[0].mxu0
  %v532 = vadd.f32 0.0, %v531
  %v533 = vpop.f32.mrb[0].mxu0
  %v534 = vadd.f32 0.0, %v533
  %535 = vdwg.mxu0
  %536 = vmatprep.subr.bf16.mxu0 %v399
  %537 = vmatpush1.bf16.msra.mxu0 %v398
  %538 = vmatprep.subr.bf16.mxu0 %v402
  %539 = vmatpush1.bf16.msra.mxu0 %v401
  %540 = vmatprep.subr.bf16.mxu0 %v405
  %541 = vmatpush1.bf16.msra.mxu0 %v404
  %542 = vmatprep.subr.bf16.mxu0 %v408
  %543 = vmatpush1.bf16.msra.mxu0 %v407
  %544 = vmatprep.subr.bf16.mxu0 %v411
  %545 = vmatpush1.bf16.msra.mxu0 %v410
  %546 = vmatprep.subr.bf16.mxu0 0
  %547 = vmatpush1.bf16.msra.mxu0 0
  %548 = vmatprep.subr.bf16.mxu0 0
  %549 = vmatpush1.bf16.msra.mxu0 0
  %550 = vmatprep.subr.bf16.mxu0 0
  %551 = vmatpush1.bf16.msra.mxu0 0
  %552 = vmatprep.subr.bf16.mxu0 0
  %553 = vmatpush1.bf16.msra.mxu0 0
  %554 = vmatprep.subr.bf16.mxu0 0
  %555 = vmatpush1.bf16.msra.mxu0 0
  %556 = vmatprep.subr.bf16.mxu0 0
  %557 = vmatpush1.bf16.msra.mxu0 0
  %558 = vmatprep.subr.bf16.mxu0 0
  %559 = vmatpush1.bf16.msra.mxu0 0
  %560 = vmatprep.subr.bf16.mxu0 0
  %561 = vmatpush1.bf16.msra.mxu0 0
  %562 = vmatprep.subr.bf16.mxu0 0
  %563 = vmatpush1.bf16.msra.mxu0 0
  %564 = vmatprep.subr.bf16.mxu0 0
  %565 = vmatpush1.bf16.msra.mxu0 0
  %566 = vmatprep.subr.bf16.mxu0 0
  %567 = vmatpush1.bf16.msra.mxu0 0
  %568 = vmatprep.mubr.bf16.mxu0 0
  %569 = vmatmul.mubr.bf16.gmra.mrb[0].mxu0 %v478
  %v570 = vpop.f32.mrb[0].mxu0
  %v571 = vadd.f32 %v518, %v570
  %v572 = vpop.f32.mrb[0].mxu0
  %v573 = vadd.f32 %v520, %v572
  %v574 = vpop.f32.mrb[0].mxu0
  %v575 = vadd.f32 %v522, %v574
  %v576 = vpop.f32.mrb[0].mxu0
  %v577 = vadd.f32 %v524, %v576
  %578 = vmatprep.mubr.bf16.mxu0 0
  %579 = vmatmul.mubr.bf16.gmra.mrb[0].mxu0 %v481
  %v580 = vpop.f32.mrb[0].mxu0
  %v581 = vadd.f32 %v528, %v580
  %v582 = vpop.f32.mrb[0].mxu0
  %v583 = vadd.f32 %v530, %v582
  %v584 = vpop.f32.mrb[0].mxu0
  %v585 = vadd.f32 %v532, %v584
  %v586 = vpop.f32.mrb[0].mxu0
  %v587 = vadd.f32 %v534, %v586
  %588 = vdwg.mxu0
  %589 = vmatprep.subr.bf16.mxu0 0
  %590 = vmatpush1.bf16.msra.mxu0 %v352
  %591 = vmatprep.subr.bf16.mxu0 0
  %592 = vmatpush1.bf16.msra.mxu0 %v355
  %593 = vmatprep.subr.bf16.mxu0 0
  %594 = vmatpush1.bf16.msra.mxu0 %v358
  %595 = vmatprep.subr.bf16.mxu0 0
  %596 = vmatpush1.bf16.msra.mxu0 %v361
  %597 = vmatprep.subr.bf16.mxu0 0
  %598 = vmatpush1.bf16.msra.mxu0 %v364
  %599 = vmatprep.subr.bf16.mxu0 0
  %600 = vmatpush1.bf16.msra.mxu0 %v367
  %601 = vmatprep.subr.bf16.mxu0 0
  %602 = vmatpush1.bf16.msra.mxu0 %v370
  %603 = vmatprep.subr.bf16.mxu0 0
  %604 = vmatpush1.bf16.msra.mxu0 %v373
  %605 = vmatprep.subr.bf16.mxu0 0
  %606 = vmatpush1.bf16.msra.mxu0 %v376
  %607 = vmatprep.subr.bf16.mxu0 0
  %608 = vmatpush1.bf16.msra.mxu0 %v379
  %609 = vmatprep.subr.bf16.mxu0 0
  %610 = vmatpush1.bf16.msra.mxu0 %v382
  %611 = vmatprep.subr.bf16.mxu0 0
  %612 = vmatpush1.bf16.msra.mxu0 %v385
  %613 = vmatprep.subr.bf16.mxu0 0
  %614 = vmatpush1.bf16.msra.mxu0 %v388
  %615 = vmatprep.subr.bf16.mxu0 0
  %616 = vmatpush1.bf16.msra.mxu0 %v391
  %617 = vmatprep.subr.bf16.mxu0 0
  %618 = vmatpush1.bf16.msra.mxu0 %v394
  %619 = vmatprep.subr.bf16.mxu0 0
  %620 = vmatpush1.bf16.msra.mxu0 %v397
  %621 = vmatprep.mubr.bf16.mxu0 %v131
  %622 = vmatmul.mubr.bf16.gmra.mrb[0].mxu0 %v130
  %v623 = vpop.f32.mrb[0].mxu0
  %v624 = vadd.f32 0.0, %v623
  %v625 = vpop.f32.mrb[0].mxu0
  %v626 = vpop.f32.mrb[0].mxu0
  %v627 = vadd.f32 0.0, %v626
  %v628 = vpop.f32.mrb[0].mxu0
  %629 = vmatprep.mubr.bf16.mxu0 %v134
  %630 = vmatmul.mubr.bf16.gmra.mrb[0].mxu0 %v133
  %v631 = vpop.f32.mrb[0].mxu0
  %v632 = vadd.f32 0.0, %v631
  %v633 = vpop.f32.mrb[0].mxu0
  %v634 = vpop.f32.mrb[0].mxu0
  %v635 = vadd.f32 0.0, %v634
  %v636 = vpop.f32.mrb[0].mxu0
  %637 = vdwg.mxu0
  %638 = vmatprep.subr.bf16.mxu0 0
  %639 = vmatpush1.bf16.msra.mxu0 %v400
  %640 = vmatprep.subr.bf16.mxu0 0
  %641 = vmatpush1.bf16.msra.mxu0 %v403
  %642 = vmatprep.subr.bf16.mxu0 0
  %643 = vmatpush1.bf16.msra.mxu0 %v406
  %644 = vmatprep.subr.bf16.mxu0 0
  %645 = vmatpush1.bf16.msra.mxu0 %v409
  %646 = vmatprep.subr.bf16.mxu0 0
  %647 = vmatpush1.bf16.msra.mxu0 %v412
  %648 = vmatprep.subr.bf16.mxu0 0
  %649 = vmatpush1.bf16.msra.mxu0 0
  %650 = vmatprep.subr.bf16.mxu0 0
  %651 = vmatpush1.bf16.msra.mxu0 0
  %652 = vmatprep.subr.bf16.mxu0 0
  %653 = vmatpush1.bf16.msra.mxu0 0
  %654 = vmatprep.subr.bf16.mxu0 0
  %655 = vmatpush1.bf16.msra.mxu0 0
  %656 = vmatprep.subr.bf16.mxu0 0
  %657 = vmatpush1.bf16.msra.mxu0 0
  %658 = vmatprep.subr.bf16.mxu0 0
  %659 = vmatpush1.bf16.msra.mxu0 0
  %660 = vmatprep.subr.bf16.mxu0 0
  %661 = vmatpush1.bf16.msra.mxu0 0
  %662 = vmatprep.subr.bf16.mxu0 0
  %663 = vmatpush1.bf16.msra.mxu0 0
  %664 = vmatprep.subr.bf16.mxu0 0
  %665 = vmatpush1.bf16.msra.mxu0 0
  %666 = vmatprep.subr.bf16.mxu0 0
  %667 = vmatpush1.bf16.msra.mxu0 0
  %668 = vmatprep.subr.bf16.mxu0 0
  %669 = vmatpush1.bf16.msra.mxu0 0
  %670 = vmatprep.mubr.bf16.mxu0 0
  %671 = vmatmul.mubr.bf16.gmra.mrb[0].mxu0 %v478
  %v672 = vpop.f32.mrb[0].mxu0
  %v673 = vadd.f32 %v624, %v672
  %v674 = vpop.f32.mrb[0].mxu0
  %v675 = vpop.f32.mrb[0].mxu0
  %v676 = vadd.f32 %v627, %v675
  %v677 = vpop.f32.mrb[0].mxu0
  %678 = vmatprep.mubr.bf16.mxu0 0
  %679 = vmatmul.mubr.bf16.gmra.mrb[0].mxu0 %v481
  %v680 = vpop.f32.mrb[0].mxu0
  %v681 = vadd.f32 %v632, %v680
  %v682 = vpop.f32.mrb[0].mxu0
  %v683 = vpop.f32.mrb[0].mxu0
  %v684 = vadd.f32 %v635, %v683
  %v685 = vpop.f32.mrb[0].mxu0
  %686 = vdwg.mxu0
  %v687 = vmax.f32 %v571, 0.0
  %v688 = vmax.f32 %v573, 0.0
  %v689 = vmax.f32 %v673, 0.0
  %v690 = vmax.f32 %v575, 0.0
  %v691 = vmax.f32 %v577, 0.0
  %v692 = vmax.f32 %v676, 0.0
  %v693 = vmax.f32 %v581, 0.0
  %v694 = vmax.f32 %v583, 0.0
  %v695 = vmax.f32 %v681, 0.0
  %v696 = vmax.f32 %v585, 0.0
  %v697 = vmax.f32 %v587, 0.0
  %v698 = vmax.f32 %v684, 0.0
  %v699 = vpack.c.bf16 %v690, %v687
  %v700 = vpack.c.bf16 %v691, %v688
  %v701 = vpack.c.bf16 %v692, %v689
  %v702 = vpack.c.bf16 %v696, %v693
  %v703 = vpack.c.bf16 %v697, %v694
  %v704 = vpack.c.bf16 %v698, %v695
  %v705 = vld [vmem:[%s2 + $0x1f8] sm:$0xf]
  %v706 = vld [vmem:[%s2 + $0x204] sm:$0xf]
  %v707 = vld [vmem:[%s2 + $0x210] sm:$0xf]
  %v708 = vld [vmem:[%s2 + $0x21c] sm:$0xf]
  %v709 = vld [vmem:[%s2 + $0x228] sm:$0xf]
  %v710 = vld [vmem:[%s2 + $0x234] sm:$0xf]
  %v711 = vld [vmem:[%s2 + $0x240] sm:$0xf]
  %v712 = vld [vmem:[%s2 + $0x24c] sm:$0xf]
  %v713 = vld [vmem:[%s2 + $0x258] sm:$0xf]
  %v714 = vld [vmem:[%s2 + $0x264] sm:$0xf]
  %v715 = vld [vmem:[%s2 + $0x270] sm:$0xf]
  %v716 = vld [vmem:[%s2 + $0x27c] sm:$0xf]
  %v717 = vld [vmem:[%s2 + $0x288] sm:$0xf]
  %v718 = vld [vmem:[%s2 + $0x294] sm:$0xf]
  %v719 = vld [vmem:[%s2 + $0x2a0] sm:$0xf]
  %v720 = vld [vmem:[%s2 + $0x2ac] sm:$0xf]
  %v721 = vld [vmem:[%s2 + $0x2b8] sm:$0xf]
  %v722 = vld [vmem:[%s2 + $0x2c4] sm:$0xf]
  %v723 = vld [vmem:[%s2 + $0x2d0] sm:$0xf]
  %v724 = vld [vmem:[%s2 + $0x2dc] sm:$0xf]
  %v725 = vld [vmem:[%s2 + $0x2e8] sm:$0xf]
  %v726 = vld [vmem:[%s2 + $0x2f4] sm:$0xf]
  %v727 = vld [vmem:[%s2 + $0x300] sm:$0xf]
  %v728 = vld [vmem:[%s2 + $0x30c] sm:$0xf]
  %v729 = vld [vmem:[%s2 + $0x318] sm:$0xf]
  %v730 = vld [vmem:[%s2 + $0x324] sm:$0xf]
  %v731 = vld [vmem:[%s2 + $0x330] sm:$0xf]
  %v732 = vld [vmem:[%s2 + $0x33c] sm:$0xf]
  %v733 = vld [vmem:[%s2 + $0x348] sm:$0xf]
  %v734 = vld [vmem:[%s2 + $0x354] sm:$0xf]
  %v735 = vld [vmem:[%s2 + $0x360] sm:$0xf]
  %v736 = vld [vmem:[%s2 + $0x36c] sm:$0xf]
  %v737 = vld [vmem:[%s2 + $0x378] sm:$0xf]
  %v738 = vld [vmem:[%s2 + $0x384] sm:$0xf]
  %v739 = vld [vmem:[%s2 + $0x390] sm:$0xf]
  %v740 = vld [vmem:[%s2 + $0x39c] sm:$0xf]
  %v741 = vld [vmem:[%s3] sm:$0x1]
  %v743 = vlaneseq
  %v744 = vshrl.u32 %v743, 7
  %v745 = vsub.s32 0, %v744
  %v746 = vrot.slane %v741, %v745
  %v784 = vunpack.c.l.b16 %v705
  %v785 = vunpack.c.l.b16 %v706
  %v786 = vunpack.c.l.b16 %v707
  %v787 = vunpack.c.l.b16 %v708
  %v788 = vunpack.c.l.b16 %v709
  %v789 = vunpack.c.l.b16 %v710
  %v790 = vunpack.c.l.b16 %v711
  %v791 = vunpack.c.l.b16 %v712
  %v792 = vunpack.c.l.b16 %v713
  %v793 = vunpack.c.l.b16 %v714
  %v794 = vunpack.c.l.b16 %v715
  %v795 = vunpack.c.l.b16 %v716
  %v796 = vunpack.c.l.b16 %v717
  %v797 = vunpack.c.l.b16 %v718
  %v798 = vunpack.c.l.b16 %v719
  %v799 = vunpack.c.l.b16 %v720
  %v800 = vunpack.c.l.b16 %v721
  %v801 = vunpack.c.l.b16 %v722
  %v802 = vunpack.c.l.b16 %v723
  %v803 = vunpack.c.l.b16 %v724
  %v804 = vunpack.c.l.b16 %v725
  %v805 = vunpack.c.l.b16 %v726
  %v806 = vunpack.c.l.b16 %v727
  %v807 = vunpack.c.l.b16 %v728
  %v808 = vunpack.c.l.b16 %v729
  %v809 = vunpack.c.l.b16 %v730
  %v810 = vunpack.c.l.b16 %v731
  %v811 = vunpack.c.l.b16 %v732
  %v812 = vunpack.c.l.b16 %v733
  %v813 = vunpack.c.l.b16 %v734
  %v814 = vunpack.c.l.b16 %v735
  %v815 = vunpack.c.l.b16 %v736
  %v816 = vunpack.c.l.b16 %v737
  %v817 = vunpack.c.l.b16 %v738
  %v818 = vunpack.c.l.b16 %v739
  %v819 = vunpack.c.l.b16 %v740
  %v820 = vpack.c.b16 %v785, %v784
  %v821 = vpack.c.b16 %v787, %v786
  %v822 = vpack.c.b16 %v789, %v788
  %v823 = vpack.c.b16 %v791, %v790
  %v824 = vpack.c.b16 %v793, %v792
  %v825 = vpack.c.b16 %v795, %v794
  %v826 = vpack.c.b16 %v797, %v796
  %v827 = vpack.c.b16 %v799, %v798
  %v828 = vpack.c.b16 %v801, %v800
  %v829 = vpack.c.b16 %v803, %v802
  %v830 = vpack.c.b16 %v805, %v804
  %v831 = vpack.c.b16 %v807, %v806
  %v832 = vpack.c.b16 %v809, %v808
  %v833 = vpack.c.b16 %v811, %v810
  %v834 = vpack.c.b16 %v813, %v812
  %v835 = vpack.c.b16 %v815, %v814
  %v836 = vpack.c.b16 %v817, %v816
  %v837 = vpack.c.b16 %v819, %v818
  %vm856 = vcmask 261120
  %v858 = vsel %vm856, %v701, 0
  %v861 = vsel %vm856, %v704, 0
  %863 = vmatprep.subr.bf16.mxu0 0
  %864 = vmatpush1.bf16.msra.mxu0 %v820
  %865 = vmatprep.subr.bf16.mxu0 0
  %866 = vmatpush1.bf16.msra.mxu0 %v821
  %867 = vmatprep.subr.bf16.mxu0 0
  %868 = vmatpush1.bf16.msra.mxu0 %v822
  %869 = vmatprep.subr.bf16.mxu0 0
  %870 = vmatpush1.bf16.msra.mxu0 %v823
  %871 = vmatprep.subr.bf16.mxu0 0
  %872 = vmatpush1.bf16.msra.mxu0 %v824
  %873 = vmatprep.subr.bf16.mxu0 0
  %874 = vmatpush1.bf16.msra.mxu0 %v825
  %875 = vmatprep.subr.bf16.mxu0 0
  %876 = vmatpush1.bf16.msra.mxu0 %v826
  %877 = vmatprep.subr.bf16.mxu0 0
  %878 = vmatpush1.bf16.msra.mxu0 %v827
  %879 = vmatprep.subr.bf16.mxu0 0
  %880 = vmatpush1.bf16.msra.mxu0 %v828
  %881 = vmatprep.subr.bf16.mxu0 0
  %882 = vmatpush1.bf16.msra.mxu0 %v829
  %883 = vmatprep.subr.bf16.mxu0 0
  %884 = vmatpush1.bf16.msra.mxu0 %v830
  %885 = vmatprep.subr.bf16.mxu0 0
  %886 = vmatpush1.bf16.msra.mxu0 %v831
  %887 = vmatprep.subr.bf16.mxu0 0
  %888 = vmatpush1.bf16.msra.mxu0 %v832
  %889 = vmatprep.subr.bf16.mxu0 0
  %890 = vmatpush1.bf16.msra.mxu0 %v833
  %891 = vmatprep.subr.bf16.mxu0 0
  %892 = vmatpush1.bf16.msra.mxu0 %v834
  %893 = vmatprep.subr.bf16.mxu0 0
  %894 = vmatpush1.bf16.msra.mxu0 %v835
  %895 = vmatprep.mubr.bf16.mxu0 %v700
  %896 = vmatmul.mubr.bf16.gmra.mrb[0].mxu0 %v699
  %v897 = vpop.f32.mrb[0].mxu0
  %v898 = vadd.f32 %v746, %v897
  %v899 = vpop.f32.mrb[0].mxu0
  %v900 = vpop.f32.mrb[0].mxu0
  %v901 = vadd.f32 %v746, %v900
  %v902 = vpop.f32.mrb[0].mxu0
  %903 = vmatprep.mubr.bf16.mxu0 %v703
  %904 = vmatmul.mubr.bf16.gmra.mrb[0].mxu0 %v702
  %v905 = vpop.f32.mrb[0].mxu0
  %v906 = vadd.f32 %v746, %v905
  %v907 = vpop.f32.mrb[0].mxu0
  %v908 = vpop.f32.mrb[0].mxu0
  %v909 = vadd.f32 %v746, %v908
  %v910 = vpop.f32.mrb[0].mxu0
  %911 = vdwg.mxu0
  %912 = vmatprep.subr.bf16.mxu0 0
  %913 = vmatpush1.bf16.msra.mxu0 %v836
  %914 = vmatprep.subr.bf16.mxu0 0
  %915 = vmatpush1.bf16.msra.mxu0 %v837
  %916 = vmatprep.subr.bf16.mxu0 0
  %917 = vmatpush1.bf16.msra.mxu0 0
  %918 = vmatprep.subr.bf16.mxu0 0
  %919 = vmatpush1.bf16.msra.mxu0 0
  %920 = vmatprep.subr.bf16.mxu0 0
  %921 = vmatpush1.bf16.msra.mxu0 0
  %922 = vmatprep.subr.bf16.mxu0 0
  %923 = vmatpush1.bf16.msra.mxu0 0
  %924 = vmatprep.subr.bf16.mxu0 0
  %925 = vmatpush1.bf16.msra.mxu0 0
  %926 = vmatprep.subr.bf16.mxu0 0
  %927 = vmatpush1.bf16.msra.mxu0 0
  %928 = vmatprep.subr.bf16.mxu0 0
  %929 = vmatpush1.bf16.msra.mxu0 0
  %930 = vmatprep.subr.bf16.mxu0 0
  %931 = vmatpush1.bf16.msra.mxu0 0
  %932 = vmatprep.subr.bf16.mxu0 0
  %933 = vmatpush1.bf16.msra.mxu0 0
  %934 = vmatprep.subr.bf16.mxu0 0
  %935 = vmatpush1.bf16.msra.mxu0 0
  %936 = vmatprep.subr.bf16.mxu0 0
  %937 = vmatpush1.bf16.msra.mxu0 0
  %938 = vmatprep.subr.bf16.mxu0 0
  %939 = vmatpush1.bf16.msra.mxu0 0
  %940 = vmatprep.subr.bf16.mxu0 0
  %941 = vmatpush1.bf16.msra.mxu0 0
  %942 = vmatprep.subr.bf16.mxu0 0
  %943 = vmatpush1.bf16.msra.mxu0 0
  %944 = vmatprep.mubr.bf16.mxu0 0
  %945 = vmatmul.mubr.bf16.gmra.mrb[0].mxu0 %v858
  %v946 = vpop.f32.mrb[0].mxu0
  %v947 = vadd.f32 %v898, %v946
  %v948 = vpop.f32.mrb[0].mxu0
  %v949 = vpop.f32.mrb[0].mxu0
  %v950 = vadd.f32 %v901, %v949
  %v951 = vpop.f32.mrb[0].mxu0
  %952 = vmatprep.mubr.bf16.mxu0 0
  %953 = vmatmul.mubr.bf16.gmra.mrb[0].mxu0 %v861
  %v954 = vpop.f32.mrb[0].mxu0
  %v955 = vadd.f32 %v906, %v954
  %v956 = vpop.f32.mrb[0].mxu0
  %v957 = vpop.f32.mrb[0].mxu0
  %v958 = vadd.f32 %v909, %v957
  %v959 = vpop.f32.mrb[0].mxu0
  %960 = vdwg.mxu0
  %v961 = vmax.f32 %v947, 0.0
  %v962 = vmax.f32 %v950, 0.0
  %v963 = vmax.f32 %v955, 0.0
  %v964 = vmax.f32 %v958, 0.0
  %vm965 = vcmask 517120
  %966 = vst.msk [vmem:[#allocation2] sm:$0x3] %vm965, %v961
  %v969 = vunpack.c.l.s4 1983009808
  %v970 = vunpack.c.0.s8 %v969
  %v971 = vlaneseq
  %v972 = vshrl.u32 %v971, 7
  %v973 = vsub.s32 %v970, %v972
  %v974 = vrot.slane %v961, %v973
  %v975 = vcombine.high %v974, %v974
  %976 = vrot.lane.b32.xlu0 %v975, 64
  %v977 = vpop.permute.xlu0 %976
  %vm979 = vcmask 1041920
  %980 = vst.msk [vmem:[#allocation2] sm:$0x3] %vm979, %v977
  %v981 = vcombine.high %v961, %v961
  %v983 = vunpack.c.l.s4 1983009808
  %v984 = vunpack.c.0.s8 %v983
  %v985 = vlaneseq
  %v986 = vshrl.u32 %v985, 7
  %v987 = vsub.s32 %v984, %v986
  %v988 = vrot.slane %v981, %v987
  %990 = vst.msk [vmem:[#allocation2 + $0x2] sm:$0x3] %vm965, %v988
  %v991 = vcombine.high %v988, %v988
  %992 = vrot.lane.b32.xlu0 %v991, 64
  %v993 = vpop.permute.xlu0 %992
  %995 = vst.msk [vmem:[#allocation2 + $0x2] sm:$0x3] %vm979, %v993
  %996 = vst.msk [vmem:[#allocation2 + $0x4] sm:$0x3] %vm965, %v962
  %v999 = vunpack.c.l.s4 1983009808
  %v1000 = vunpack.c.0.s8 %v999
  %v1001 = vlaneseq
  %v1002 = vshrl.u32 %v1001, 7
  %v1003 = vsub.s32 %v1000, %v1002
  %v1004 = vrot.slane %v962, %v1003
  %v1005 = vcombine.high %v1004, %v1004
  %1006 = vrot.lane.b32.xlu0 %v1005, 64
  %v1007 = vpop.permute.xlu0 %1006
  %1009 = vst.msk [vmem:[#allocation2 + $0x4] sm:$0x3] %vm979, %v1007
  %v1010 = vcombine.high %v962, %v962
  %v1012 = vunpack.c.l.s4 1983009808
  %v1013 = vunpack.c.0.s8 %v1012
  %v1014 = vlaneseq
  %v1015 = vshrl.u32 %v1014, 7
  %v1016 = vsub.s32 %v1013, %v1015
  %v1017 = vrot.slane %v1010, %v1016
  %1019 = vst.msk [vmem:[#allocation2 + $0x6] sm:$0x3] %vm965, %v1017
  %v1020 = vcombine.high %v1017, %v1017
  %1021 = vrot.lane.b32.xlu0 %v1020, 64
  %v1022 = vpop.permute.xlu0 %1021
  %1024 = vst.msk [vmem:[#allocation2 + $0x6] sm:$0x3] %vm979, %v1022
  %1025 = vst.msk [vmem:[#allocation2 + $0x8] sm:$0x3] %vm965, %v963
  %v1028 = vunpack.c.l.s4 1983009808
  %v1029 = vunpack.c.0.s8 %v1028
  %v1030 = vlaneseq
  %v1031 = vshrl.u32 %v1030, 7
  %v1032 = vsub.s32 %v1029, %v1031
  %v1033 = vrot.slane %v963, %v1032
  %v1034 = vcombine.high %v1033, %v1033
  %1035 = vrot.lane.b32.xlu0 %v1034, 64
  %v1036 = vpop.permute.xlu0 %1035
  %1038 = vst.msk [vmem:[#allocation2 + $0x8] sm:$0x3] %vm979, %v1036
  %v1039 = vcombine.high %v963, %v963
  %v1041 = vunpack.c.l.s4 1983009808
  %v1042 = vunpack.c.0.s8 %v1041
  %v1043 = vlaneseq
  %v1044 = vshrl.u32 %v1043, 7
  %v1045 = vsub.s32 %v1042, %v1044
  %v1046 = vrot.slane %v1039, %v1045
  %1048 = vst.msk [vmem:[#allocation2 + $0xa] sm:$0x3] %vm965, %v1046
  %v1049 = vcombine.high %v1046, %v1046
  %1050 = vrot.lane.b32.xlu0 %v1049, 64
  %v1051 = vpop.permute.xlu0 %1050
  %1053 = vst.msk [vmem:[#allocation2 + $0xa] sm:$0x3] %vm979, %v1051
  %1054 = vst.msk [vmem:[#allocation2 + $0xc] sm:$0x3] %vm965, %v964
  %v1057 = vunpack.c.l.s4 1983009808
  %v1058 = vunpack.c.0.s8 %v1057
  %v1059 = vlaneseq
  %v1060 = vshrl.u32 %v1059, 7
  %v1061 = vsub.s32 %v1058, %v1060
  %v1062 = vrot.slane %v964, %v1061
  %v1063 = vcombine.high %v1062, %v1062
  %1064 = vrot.lane.b32.xlu0 %v1063, 64
  %v1065 = vpop.permute.xlu0 %1064
  %1067 = vst.msk [vmem:[#allocation2 + $0xc] sm:$0x3] %vm979, %v1065
  %v1068 = vcombine.high %v964, %v964
  %v1070 = vunpack.c.l.s4 1983009808
  %v1071 = vunpack.c.0.s8 %v1070
  %v1072 = vlaneseq
  %v1073 = vshrl.u32 %v1072, 7
  %v1074 = vsub.s32 %v1071, %v1073
  %v1075 = vrot.slane %v1068, %v1074
  %1077 = vst.msk [vmem:[#allocation2 + $0xe] sm:$0x3] %vm965, %v1075
  %v1078 = vcombine.high %v1075, %v1075
  %1079 = vrot.lane.b32.xlu0 %v1078, 64
  %v1080 = vpop.permute.xlu0 %1079
  %1082 = vst.msk [vmem:[#allocation2 + $0xe] sm:$0x3] %vm979, %v1080
  %v1083 = vld [vmem:[#allocation2] sm:$0xff]
  %v1084 = vld [vmem:[#allocation2 + $0x8] sm:$0xff]
  %v1087 = vcombine.high %v1083, %v1083
  %v1089 = vunpack.c.l.s4 1983009808
  %v1090 = vunpack.c.0.s8 %v1089
  %v1091 = vlaneseq
  %v1092 = vshrl.u32 %v1091, 7
  %v1093 = vsub.s32 %v1090, %v1092
  %v1094 = vrot.slane %v1083, %v1093
  %v1096 = vunpack.c.l.s4 1983009808
  %v1097 = vunpack.c.0.s8 %v1096
  %v1098 = vlaneseq
  %v1099 = vshrl.u32 %v1098, 7
  %v1100 = vsub.s32 %v1097, %v1099
  %v1101 = vrot.slane %v1087, %v1100
  %v1102 = vcombine.high %v1094, %v1094
  %v1103 = vcombine.high %v1101, %v1101
  %v1104 = vcombine.high %v1084, %v1084
  %v1106 = vunpack.c.l.s4 1983009808
  %v1107 = vunpack.c.0.s8 %v1106
  %v1108 = vlaneseq
  %v1109 = vshrl.u32 %v1108, 7
  %v1110 = vsub.s32 %v1107, %v1109
  %v1111 = vrot.slane %v1084, %v1110
  %v1113 = vunpack.c.l.s4 1983009808
  %v1114 = vunpack.c.0.s8 %v1113
  %v1115 = vlaneseq
  %v1116 = vshrl.u32 %v1115, 7
  %v1117 = vsub.s32 %v1114, %v1116
  %v1118 = vrot.slane %v1104, %v1117
  %v1119 = vcombine.high %v1111, %v1111
  %v1120 = vcombine.high %v1118, %v1118
  %v1129 = vpack.c.bf16 %v1094, %v1094
  %v1130 = vpack.c.bf16 %v1102, %v1102
  %v1131 = vpack.c.bf16 %v1101, %v1101
  %v1132 = vpack.c.bf16 %v1103, %v1103
  %v1133 = vpack.c.bf16 %v1111, %v1111
  %v1134 = vpack.c.bf16 %v1119, %v1119
  %v1135 = vpack.c.bf16 %v1118, %v1118
  %v1136 = vpack.c.bf16 %v1120, %v1120
  %v1137 = vld [vmem:[%s2 + $0x3a8] sm:$0xff]
  %v1138 = vld [vmem:[%s2 + $0x3b4] sm:$0xff]
  %v1139 = vld [vmem:[%s2 + $0x3c0] sm:$0xff]
  %v1140 = vld [vmem:[%s2 + $0x3cc] sm:$0xff]
  %v1141 = vld [vmem:[%s2 + $0x3d8] sm:$0xff]
  %v1142 = vld [vmem:[%s2 + $0x3e4] sm:$0xff]
  %v1143 = vld [vmem:[%s2 + $0x3f0] sm:$0xff]
  %v1144 = vld [vmem:[%s2 + $0x3fc] sm:$0xff]
  %v1145 = vld [vmem:[%s2 + $0x408] sm:$0xff]
  %v1146 = vld [vmem:[%s2 + $0x414] sm:$0xff]
  %v1147 = vld [vmem:[%s2 + $0x420] sm:$0xff]
  %v1148 = vld [vmem:[%s2 + $0x42c] sm:$0xff]
  %v1149 = vld [vmem:[%s2 + $0x438] sm:$0xff]
  %v1150 = vld [vmem:[%s2 + $0x444] sm:$0xff]
  %v1151 = vld [vmem:[%s2 + $0x450] sm:$0xff]
  %v1152 = vld [vmem:[%s2 + $0x45c] sm:$0xff]
  %v1153 = vld [vmem:[%s2 + $0x468] sm:$0xff]
  %v1154 = vld [vmem:[%s2 + $0x474] sm:$0xff]
  %v1155 = vld [vmem:[%s2 + $0x480] sm:$0xff]
  %v1156 = vld [vmem:[%s2 + $0x48c] sm:$0xff]
  %v1157 = vld [vmem:[%s2 + $0x498] sm:$0xff]
  %v1158 = vld [vmem:[%s2 + $0x4a4] sm:$0xff]
  %v1159 = vld [vmem:[%s2 + $0x4b0] sm:$0xff]
  %v1160 = vld [vmem:[%s2 + $0x4bc] sm:$0xff]
  %v1161 = vld [vmem:[%s2 + $0x4c8] sm:$0xff]
  %v1162 = vld [vmem:[%s2 + $0x4d4] sm:$0xff]
  %v1163 = vld [vmem:[%s2 + $0x4e0] sm:$0xff]
  %v1164 = vld [vmem:[%s2 + $0x4ec] sm:$0xff]
  %v1165 = vld [vmem:[%s2 + $0x4f8] sm:$0xff]
  %v1166 = vld [vmem:[%s2 + $0x504] sm:$0xff]
  %v1167 = vld [vmem:[%s2 + $0x510] sm:$0xff]
  %v1168 = vld [vmem:[%s2 + $0x51c] sm:$0xff]
  %v1169 = vld [vmem:[%s2 + $0x528] sm:$0xff]
  %v1170 = vld [vmem:[%s2 + $0x534] sm:$0xff]
  %v1171 = vld [vmem:[%s2 + $0x540] sm:$0xff]
  %v1172 = vld [vmem:[%s2 + $0x54c] sm:$0xff]
  %v1173 = vld [vmem:[%s2 + $0x558] sm:$0xff]
  %v1174 = vld [vmem:[%s2 + $0x564] sm:$0xff]
  %v1175 = vld [vmem:[%s2 + $0x570] sm:$0xff]
  %v1176 = vld [vmem:[%s2 + $0x57c] sm:$0xff]
  %v1177 = vld [vmem:[%s2 + $0x588] sm:$0xff]
  %v1178 = vld [vmem:[%s2 + $0x594] sm:$0xff]
  %v1179 = vld [vmem:[%s2 + $0x5a0] sm:$0xff]
  %v1180 = vld [vmem:[%s2 + $0x5ac] sm:$0xff]
  %v1181 = vld [vmem:[%s2 + $0x5b8] sm:$0xff]
  %v1182 = vld [vmem:[%s2 + $0x5c4] sm:$0xff]
  %v1183 = vld [vmem:[%s2 + $0x5d0] sm:$0xff]
  %v1184 = vld [vmem:[%s2 + $0x5dc] sm:$0xff]
  %v1185 = vld [vmem:[%s2 + $0x5e8] sm:$0xff]
  %v1186 = vld [vmem:[%s2 + $0x5f4] sm:$0xff]
  %v1187 = vld [vmem:[%s2 + $0x600] sm:$0xff]
  %v1188 = vld [vmem:[%s2 + $0x60c] sm:$0xff]
  %v1189 = vld [vmem:[%s2 + $0x618] sm:$0xff]
  %v1190 = vld [vmem:[%s2 + $0x624] sm:$0xff]
  %v1191 = vld [vmem:[%s2 + $0x630] sm:$0xff]
  %v1192 = vld [vmem:[%s2 + $0x63c] sm:$0xff]
  %v1193 = vld [vmem:[%s2 + $0x648] sm:$0xff]
  %v1194 = vld [vmem:[%s2 + $0x654] sm:$0xff]
  %v1195 = vld [vmem:[%s2 + $0x660] sm:$0xff]
  %v1196 = vld [vmem:[%s2 + $0x66c] sm:$0xff]
  %v1197 = vld [vmem:[%s2 + $0x678] sm:$0xff]
  %v1198 = vld [vmem:[%s2 + $0x684] sm:$0xff]
  %v1199 = vld [vmem:[%s2 + $0x690] sm:$0xff]
  %v1200 = vld [vmem:[%s2 + $0x69c] sm:$0xff]
  %v1201 = vld [vmem:[%s2 + $0x6a8] sm:$0xff]
  %v1202 = vld [vmem:[%s2 + $0x6b4] sm:$0xff]
  %v1203 = vld [vmem:[%s2 + $0x6c0] sm:$0xff]
  %v1204 = vld [vmem:[%s2 + $0x6cc] sm:$0xff]
  %v1205 = vld [vmem:[%s2 + $0x6d8] sm:$0xff]
  %v1206 = vld [vmem:[%s2 + $0x6e4] sm:$0xff]
  %v1207 = vld [vmem:[%s2 + $0x6f0] sm:$0xff]
  %v1208 = vld [vmem:[%s2 + $0x6fc] sm:$0xff]
  %v1209 = vld [vmem:[%s2 + $0x708] sm:$0xff]
  %v1210 = vld [vmem:[%s2 + $0x714] sm:$0xff]
  %v1211 = vld [vmem:[%s2 + $0x720] sm:$0xff]
  %v1212 = vld [vmem:[%s2 + $0x72c] sm:$0xff]
  %v1213 = vld [vmem:[%s2 + $0x738] sm:$0xff]
  %v1214 = vld [vmem:[%s2 + $0x744] sm:$0xff]
  %v1215 = vld [vmem:[%s2 + $0x750] sm:$0xff]
  %v1216 = vld [vmem:[%s2 + $0x75c] sm:$0xff]
  %v1217 = vld [vmem:[%s2 + $0x768] sm:$0xff]
  %v1218 = vld [vmem:[%s2 + $0x774] sm:$0xff]
  %v1219 = vld [vmem:[%s2 + $0x780] sm:$0xff]
  %v1220 = vld [vmem:[%s2 + $0x78c] sm:$0xff]
  %v1221 = vld [vmem:[%s2 + $0x798] sm:$0xff]
  %v1222 = vld [vmem:[%s2 + $0x7a4] sm:$0xff]
  %v1223 = vld [vmem:[%s2 + $0x7b0] sm:$0xff]
  %v1224 = vld [vmem:[%s2 + $0x7bc] sm:$0xff]
  %v1225 = vld [vmem:[%s2 + $0x7c8] sm:$0xff]
  %v1226 = vld [vmem:[%s2 + $0x7d4] sm:$0xff]
  %v1227 = vld [vmem:[%s2 + $0x7e0] sm:$0xff]
  %v1228 = vld [vmem:[%s2 + $0x7ec] sm:$0xff]
  %v1229 = vld [vmem:[%s2 + $0x7f8] sm:$0xff]
  %v1230 = vld [vmem:[%s2 + $0x804] sm:$0xff]
  %v1231 = vld [vmem:[%s2 + $0x810] sm:$0xff]
  %v1232 = vld [vmem:[%s2 + $0x81c] sm:$0xff]
  %v1233 = vld [vmem:[%s2 + $0x828] sm:$0xff]
  %v1234 = vld [vmem:[%s2 + $0x834] sm:$0xff]
  %v1235 = vld [vmem:[%s2 + $0x840] sm:$0xff]
  %v1236 = vld [vmem:[%s2 + $0x84c] sm:$0xff]
  %v1237 = vld [vmem:[%s2 + $0x858] sm:$0xff]
  %v1238 = vld [vmem:[%s2 + $0x864] sm:$0xff]
  %v1239 = vld [vmem:[%s2 + $0x870] sm:$0xff]
  %v1240 = vld [vmem:[%s2 + $0x87c] sm:$0xff]
  %v1241 = vld [vmem:[%s2 + $0x888] sm:$0xff]
  %v1242 = vld [vmem:[%s2 + $0x894] sm:$0xff]
  %v1243 = vld [vmem:[%s2 + $0x8a0] sm:$0xff]
  %v1244 = vld [vmem:[%s2 + $0x8ac] sm:$0xff]
  %v1245 = vld [vmem:[%s2 + $0x8b8] sm:$0xff]
  %v1246 = vld [vmem:[%s2 + $0x8c4] sm:$0xff]
  %v1247 = vld [vmem:[%s2 + $0x8d0] sm:$0xff]
  %v1248 = vld [vmem:[%s2 + $0x8dc] sm:$0xff]
  %v1249 = vld [vmem:[%s2 + $0x8e8] sm:$0xff]
  %v1250 = vld [vmem:[%s2 + $0x8f4] sm:$0xff]
  %v1251 = vld [vmem:[%s2 + $0x900] sm:$0xff]
  %v1252 = vld [vmem:[%s2 + $0x90c] sm:$0xff]
  %v1253 = vld [vmem:[%s2 + $0x918] sm:$0xff]
  %v1254 = vld [vmem:[%s2 + $0x924] sm:$0xff]
  %v1255 = vld [vmem:[%s2 + $0x930] sm:$0xff]
  %v1256 = vld [vmem:[%s2 + $0x93c] sm:$0xff]
  %v1257 = vld [vmem:[%s2 + $0x948] sm:$0xff]
  %v1258 = vld [vmem:[%s2 + $0x954] sm:$0xff]
  %v1259 = vld [vmem:[%s2 + $0x960] sm:$0xff]
  %v1260 = vld [vmem:[%s2 + $0x96c] sm:$0xff]
  %v1261 = vld [vmem:[%s2 + $0x978] sm:$0xff]
  %v1262 = vld [vmem:[%s2 + $0x984] sm:$0xff]
  %v1263 = vld [vmem:[%s2 + $0x990] sm:$0xff]
  %v1264 = vld [vmem:[%s2 + $0x99c] sm:$0xff]
  %v1265 = vld [vmem:[%s3 + $0x1] sm:$0x3]
  %v1267 = vlaneseq
  %v1268 = vshrl.u32 %v1267, 7
  %v1269 = vsub.s32 0, %v1268
  %v1270 = vrot.slane %v1265, %v1269
  %v1271 = vlaneseq
  %v1272 = vshrl.u32 %v1271, 7
  %v1273 = vsub.s32 1, %v1272
  %v1274 = vrot.slane %v1265, %v1273
  %v1405 = vunpack.c.l.b16 %v1137
  %v1406 = vunpack.c.h.b16 %v1137
  %v1407 = vunpack.c.l.b16 %v1138
  %v1408 = vunpack.c.h.b16 %v1138
  %v1409 = vunpack.c.l.b16 %v1139
  %v1410 = vunpack.c.h.b16 %v1139
  %v1411 = vunpack.c.l.b16 %v1140
  %v1412 = vunpack.c.h.b16 %v1140
  %v1413 = vunpack.c.l.b16 %v1141
  %v1414 = vunpack.c.h.b16 %v1141
  %v1415 = vunpack.c.l.b16 %v1142
  %v1416 = vunpack.c.h.b16 %v1142
  %v1417 = vunpack.c.l.b16 %v1143
  %v1418 = vunpack.c.h.b16 %v1143
  %v1419 = vunpack.c.l.b16 %v1144
  %v1420 = vunpack.c.h.b16 %v1144
  %v1421 = vunpack.c.l.b16 %v1145
  %v1422 = vunpack.c.h.b16 %v1145
  %v1423 = vunpack.c.l.b16 %v1146
  %v1424 = vunpack.c.h.b16 %v1146
  %v1425 = vunpack.c.l.b16 %v1147
  %v1426 = vunpack.c.h.b16 %v1147
  %v1427 = vunpack.c.l.b16 %v1148
  %v1428 = vunpack.c.h.b16 %v1148
  %v1429 = vunpack.c.l.b16 %v1149
  %v1430 = vunpack.c.h.b16 %v1149
  %v1431 = vunpack.c.l.b16 %v1150
  %v1432 = vunpack.c.h.b16 %v1150
  %v1433 = vunpack.c.l.b16 %v1151
  %v1434 = vunpack.c.h.b16 %v1151
  %v1435 = vunpack.c.l.b16 %v1152
  %v1436 = vunpack.c.h.b16 %v1152
  %v1437 = vunpack.c.l.b16 %v1153
  %v1438 = vunpack.c.h.b16 %v1153
  %v1439 = vunpack.c.l.b16 %v1154
  %v1440 = vunpack.c.h.b16 %v1154
  %v1441 = vunpack.c.l.b16 %v1155
  %v1442 = vunpack.c.h.b16 %v1155
  %v1443 = vunpack.c.l.b16 %v1156
  %v1444 = vunpack.c.h.b16 %v1156
  %v1445 = vunpack.c.l.b16 %v1157
  %v1446 = vunpack.c.h.b16 %v1157
  %v1447 = vunpack.c.l.b16 %v1158
  %v1448 = vunpack.c.h.b16 %v1158
  %v1449 = vunpack.c.l.b16 %v1159
  %v1450 = vunpack.c.h.b16 %v1159
  %v1451 = vunpack.c.l.b16 %v1160
  %v1452 = vunpack.c.h.b16 %v1160
  %v1453 = vunpack.c.l.b16 %v1161
  %v1454 = vunpack.c.h.b16 %v1161
  %v1455 = vunpack.c.l.b16 %v1162
  %v1456 = vunpack.c.h.b16 %v1162
  %v1457 = vunpack.c.l.b16 %v1163
  %v1458 = vunpack.c.h.b16 %v1163
  %v1459 = vunpack.c.l.b16 %v1164
  %v1460 = vunpack.c.h.b16 %v1164
  %v1461 = vunpack.c.l.b16 %v1165
  %v1462 = vunpack.c.h.b16 %v1165
  %v1463 = vunpack.c.l.b16 %v1166
  %v1464 = vunpack.c.h.b16 %v1166
  %v1465 = vunpack.c.l.b16 %v1167
  %v1466 = vunpack.c.h.b16 %v1167
  %v1467 = vunpack.c.l.b16 %v1168
  %v1468 = vunpack.c.h.b16 %v1168
  %v1469 = vunpack.c.l.b16 %v1169
  %v1470 = vunpack.c.h.b16 %v1169
  %v1471 = vunpack.c.l.b16 %v1170
  %v1472 = vunpack.c.h.b16 %v1170
  %v1473 = vunpack.c.l.b16 %v1171
  %v1474 = vunpack.c.h.b16 %v1171
  %v1475 = vunpack.c.l.b16 %v1172
  %v1476 = vunpack.c.h.b16 %v1172
  %v1477 = vunpack.c.l.b16 %v1173
  %v1478 = vunpack.c.h.b16 %v1173
  %v1479 = vunpack.c.l.b16 %v1174
  %v1480 = vunpack.c.h.b16 %v1174
  %v1481 = vunpack.c.l.b16 %v1175
  %v1482 = vunpack.c.h.b16 %v1175
  %v1483 = vunpack.c.l.b16 %v1176
  %v1484 = vunpack.c.h.b16 %v1176
  %v1485 = vunpack.c.l.b16 %v1177
  %v1486 = vunpack.c.h.b16 %v1177
  %v1487 = vunpack.c.l.b16 %v1178
  %v1488 = vunpack.c.h.b16 %v1178
  %v1489 = vunpack.c.l.b16 %v1179
  %v1490 = vunpack.c.h.b16 %v1179
  %v1491 = vunpack.c.l.b16 %v1180
  %v1492 = vunpack.c.h.b16 %v1180
  %v1493 = vunpack.c.l.b16 %v1181
  %v1494 = vunpack.c.h.b16 %v1181
  %v1495 = vunpack.c.l.b16 %v1182
  %v1496 = vunpack.c.h.b16 %v1182
  %v1497 = vunpack.c.l.b16 %v1183
  %v1498 = vunpack.c.h.b16 %v1183
  %v1499 = vunpack.c.l.b16 %v1184
  %v1500 = vunpack.c.h.b16 %v1184
  %v1501 = vunpack.c.l.b16 %v1185
  %v1502 = vunpack.c.h.b16 %v1185
  %v1503 = vunpack.c.l.b16 %v1186
  %v1504 = vunpack.c.h.b16 %v1186
  %v1505 = vunpack.c.l.b16 %v1187
  %v1506 = vunpack.c.h.b16 %v1187
  %v1507 = vunpack.c.l.b16 %v1188
  %v1508 = vunpack.c.h.b16 %v1188
  %v1509 = vunpack.c.l.b16 %v1189
  %v1510 = vunpack.c.h.b16 %v1189
  %v1511 = vunpack.c.l.b16 %v1190
  %v1512 = vunpack.c.h.b16 %v1190
  %v1513 = vunpack.c.l.b16 %v1191
  %v1514 = vunpack.c.h.b16 %v1191
  %v1515 = vunpack.c.l.b16 %v1192
  %v1516 = vunpack.c.h.b16 %v1192
  %v1517 = vunpack.c.l.b16 %v1193
  %v1518 = vunpack.c.h.b16 %v1193
  %v1519 = vunpack.c.l.b16 %v1194
  %v1520 = vunpack.c.h.b16 %v1194
  %v1521 = vunpack.c.l.b16 %v1195
  %v1522 = vunpack.c.h.b16 %v1195
  %v1523 = vunpack.c.l.b16 %v1196
  %v1524 = vunpack.c.h.b16 %v1196
  %v1525 = vunpack.c.l.b16 %v1197
  %v1526 = vunpack.c.h.b16 %v1197
  %v1527 = vunpack.c.l.b16 %v1198
  %v1528 = vunpack.c.h.b16 %v1198
  %v1529 = vunpack.c.l.b16 %v1199
  %v1530 = vunpack.c.h.b16 %v1199
  %v1531 = vunpack.c.l.b16 %v1200
  %v1532 = vunpack.c.h.b16 %v1200
  %v1533 = vunpack.c.l.b16 %v1201
  %v1534 = vunpack.c.h.b16 %v1201
  %v1535 = vunpack.c.l.b16 %v1202
  %v1536 = vunpack.c.h.b16 %v1202
  %v1537 = vunpack.c.l.b16 %v1203
  %v1538 = vunpack.c.h.b16 %v1203
  %v1539 = vunpack.c.l.b16 %v1204
  %v1540 = vunpack.c.h.b16 %v1204
  %v1541 = vunpack.c.l.b16 %v1205
  %v1542 = vunpack.c.h.b16 %v1205
  %v1543 = vunpack.c.l.b16 %v1206
  %v1544 = vunpack.c.h.b16 %v1206
  %v1545 = vunpack.c.l.b16 %v1207
  %v1546 = vunpack.c.h.b16 %v1207
  %v1547 = vunpack.c.l.b16 %v1208
  %v1548 = vunpack.c.h.b16 %v1208
  %v1549 = vunpack.c.l.b16 %v1209
  %v1550 = vunpack.c.h.b16 %v1209
  %v1551 = vunpack.c.l.b16 %v1210
  %v1552 = vunpack.c.h.b16 %v1210
  %v1553 = vunpack.c.l.b16 %v1211
  %v1554 = vunpack.c.h.b16 %v1211
  %v1555 = vunpack.c.l.b16 %v1212
  %v1556 = vunpack.c.h.b16 %v1212
  %v1557 = vunpack.c.l.b16 %v1213
  %v1558 = vunpack.c.h.b16 %v1213
  %v1559 = vunpack.c.l.b16 %v1214
  %v1560 = vunpack.c.h.b16 %v1214
  %v1561 = vunpack.c.l.b16 %v1215
  %v1562 = vunpack.c.h.b16 %v1215
  %v1563 = vunpack.c.l.b16 %v1216
  %v1564 = vunpack.c.h.b16 %v1216
  %v1565 = vunpack.c.l.b16 %v1217
  %v1566 = vunpack.c.h.b16 %v1217
  %v1567 = vunpack.c.l.b16 %v1218
  %v1568 = vunpack.c.h.b16 %v1218
  %v1569 = vunpack.c.l.b16 %v1219
  %v1570 = vunpack.c.h.b16 %v1219
  %v1571 = vunpack.c.l.b16 %v1220
  %v1572 = vunpack.c.h.b16 %v1220
  %v1573 = vunpack.c.l.b16 %v1221
  %v1574 = vunpack.c.h.b16 %v1221
  %v1575 = vunpack.c.l.b16 %v1222
  %v1576 = vunpack.c.h.b16 %v1222
  %v1577 = vunpack.c.l.b16 %v1223
  %v1578 = vunpack.c.h.b16 %v1223
  %v1579 = vunpack.c.l.b16 %v1224
  %v1580 = vunpack.c.h.b16 %v1224
  %v1581 = vunpack.c.l.b16 %v1225
  %v1582 = vunpack.c.h.b16 %v1225
  %v1583 = vunpack.c.l.b16 %v1226
  %v1584 = vunpack.c.h.b16 %v1226
  %v1585 = vunpack.c.l.b16 %v1227
  %v1586 = vunpack.c.h.b16 %v1227
  %v1587 = vunpack.c.l.b16 %v1228
  %v1588 = vunpack.c.h.b16 %v1228
  %v1589 = vunpack.c.l.b16 %v1229
  %v1590 = vunpack.c.h.b16 %v1229
  %v1591 = vunpack.c.l.b16 %v1230
  %v1592 = vunpack.c.h.b16 %v1230
  %v1593 = vunpack.c.l.b16 %v1231
  %v1594 = vunpack.c.h.b16 %v1231
  %v1595 = vunpack.c.l.b16 %v1232
  %v1596 = vunpack.c.h.b16 %v1232
  %v1597 = vunpack.c.l.b16 %v1233
  %v1598 = vunpack.c.h.b16 %v1233
  %v1599 = vunpack.c.l.b16 %v1234
  %v1600 = vunpack.c.h.b16 %v1234
  %v1601 = vunpack.c.l.b16 %v1235
  %v1602 = vunpack.c.h.b16 %v1235
  %v1603 = vunpack.c.l.b16 %v1236
  %v1604 = vunpack.c.h.b16 %v1236
  %v1605 = vunpack.c.l.b16 %v1237
  %v1606 = vunpack.c.h.b16 %v1237
  %v1607 = vunpack.c.l.b16 %v1238
  %v1608 = vunpack.c.h.b16 %v1238
  %v1609 = vunpack.c.l.b16 %v1239
  %v1610 = vunpack.c.h.b16 %v1239
  %v1611 = vunpack.c.l.b16 %v1240
  %v1612 = vunpack.c.h.b16 %v1240
  %v1613 = vunpack.c.l.b16 %v1241
  %v1614 = vunpack.c.h.b16 %v1241
  %v1615 = vunpack.c.l.b16 %v1242
  %v1616 = vunpack.c.h.b16 %v1242
  %v1617 = vunpack.c.l.b16 %v1243
  %v1618 = vunpack.c.h.b16 %v1243
  %v1619 = vunpack.c.l.b16 %v1244
  %v1620 = vunpack.c.h.b16 %v1244
  %v1621 = vunpack.c.l.b16 %v1245
  %v1622 = vunpack.c.h.b16 %v1245
  %v1623 = vunpack.c.l.b16 %v1246
  %v1624 = vunpack.c.h.b16 %v1246
  %v1625 = vunpack.c.l.b16 %v1247
  %v1626 = vunpack.c.h.b16 %v1247
  %v1627 = vunpack.c.l.b16 %v1248
  %v1628 = vunpack.c.h.b16 %v1248
  %v1629 = vunpack.c.l.b16 %v1249
  %v1630 = vunpack.c.h.b16 %v1249
  %v1631 = vunpack.c.l.b16 %v1250
  %v1632 = vunpack.c.h.b16 %v1250
  %v1633 = vunpack.c.l.b16 %v1251
  %v1634 = vunpack.c.h.b16 %v1251
  %v1635 = vunpack.c.l.b16 %v1252
  %v1636 = vunpack.c.h.b16 %v1252
  %v1637 = vunpack.c.l.b16 %v1253
  %v1638 = vunpack.c.h.b16 %v1253
  %v1639 = vunpack.c.l.b16 %v1254
  %v1640 = vunpack.c.h.b16 %v1254
  %v1641 = vunpack.c.l.b16 %v1255
  %v1642 = vunpack.c.h.b16 %v1255
  %v1643 = vunpack.c.l.b16 %v1256
  %v1644 = vunpack.c.h.b16 %v1256
  %v1645 = vunpack.c.l.b16 %v1257
  %v1646 = vunpack.c.h.b16 %v1257
  %v1647 = vunpack.c.l.b16 %v1258
  %v1648 = vunpack.c.h.b16 %v1258
  %v1649 = vunpack.c.l.b16 %v1259
  %v1650 = vunpack.c.h.b16 %v1259
  %v1651 = vunpack.c.l.b16 %v1260
  %v1652 = vunpack.c.h.b16 %v1260
  %v1653 = vunpack.c.l.b16 %v1261
  %v1654 = vunpack.c.h.b16 %v1261
  %v1655 = vunpack.c.l.b16 %v1262
  %v1656 = vunpack.c.h.b16 %v1262
  %v1657 = vunpack.c.l.b16 %v1263
  %v1658 = vunpack.c.h.b16 %v1263
  %v1659 = vunpack.c.l.b16 %v1264
  %v1660 = vunpack.c.h.b16 %v1264
  %v1661 = vpack.c.b16 %v1407, %v1405
  %v1662 = vpack.c.b16 %v1408, %v1406
  %v1663 = vpack.c.b16 %v1411, %v1409
  %v1664 = vpack.c.b16 %v1412, %v1410
  %v1665 = vpack.c.b16 %v1415, %v1413
  %v1666 = vpack.c.b16 %v1416, %v1414
  %v1667 = vpack.c.b16 %v1419, %v1417
  %v1668 = vpack.c.b16 %v1420, %v1418
  %v1669 = vpack.c.b16 %v1423, %v1421
  %v1670 = vpack.c.b16 %v1424, %v1422
  %v1671 = vpack.c.b16 %v1427, %v1425
  %v1672 = vpack.c.b16 %v1428, %v1426
  %v1673 = vpack.c.b16 %v1431, %v1429
  %v1674 = vpack.c.b16 %v1432, %v1430
  %v1675 = vpack.c.b16 %v1435, %v1433
  %v1676 = vpack.c.b16 %v1436, %v1434
  %v1677 = vpack.c.b16 %v1439, %v1437
  %v1678 = vpack.c.b16 %v1440, %v1438
  %v1679 = vpack.c.b16 %v1443, %v1441
  %v1680 = vpack.c.b16 %v1444, %v1442
  %v1681 = vpack.c.b16 %v1447, %v1445
  %v1682 = vpack.c.b16 %v1448, %v1446
  %v1683 = vpack.c.b16 %v1451, %v1449
  %v1684 = vpack.c.b16 %v1452, %v1450
  %v1685 = vpack.c.b16 %v1455, %v1453
  %v1686 = vpack.c.b16 %v1456, %v1454
  %v1687 = vpack.c.b16 %v1459, %v1457
  %v1688 = vpack.c.b16 %v1460, %v1458
  %v1689 = vpack.c.b16 %v1463, %v1461
  %v1690 = vpack.c.b16 %v1464, %v1462
  %v1691 = vpack.c.b16 %v1467, %v1465
  %v1692 = vpack.c.b16 %v1468, %v1466
  %v1693 = vpack.c.b16 %v1471, %v1469
  %v1694 = vpack.c.b16 %v1472, %v1470
  %v1695 = vpack.c.b16 %v1475, %v1473
  %v1696 = vpack.c.b16 %v1476, %v1474
  %v1697 = vpack.c.b16 %v1479, %v1477
  %v1698 = vpack.c.b16 %v1480, %v1478
  %v1699 = vpack.c.b16 %v1483, %v1481
  %v1700 = vpack.c.b16 %v1484, %v1482
  %v1701 = vpack.c.b16 %v1487, %v1485
  %v1702 = vpack.c.b16 %v1488, %v1486
  %v1703 = vpack.c.b16 %v1491, %v1489
  %v1704 = vpack.c.b16 %v1492, %v1490
  %v1705 = vpack.c.b16 %v1495, %v1493
  %v1706 = vpack.c.b16 %v1496, %v1494
  %v1707 = vpack.c.b16 %v1499, %v1497
  %v1708 = vpack.c.b16 %v1500, %v1498
  %v1709 = vpack.c.b16 %v1503, %v1501
  %v1710 = vpack.c.b16 %v1504, %v1502
  %v1711 = vpack.c.b16 %v1507, %v1505
  %v1712 = vpack.c.b16 %v1508, %v1506
  %v1713 = vpack.c.b16 %v1511, %v1509
  %v1714 = vpack.c.b16 %v1512, %v1510
  %v1715 = vpack.c.b16 %v1515, %v1513
  %v1716 = vpack.c.b16 %v1516, %v1514
  %v1717 = vpack.c.b16 %v1519, %v1517
  %v1718 = vpack.c.b16 %v1520, %v1518
  %v1719 = vpack.c.b16 %v1523, %v1521
  %v1720 = vpack.c.b16 %v1524, %v1522
  %v1721 = vpack.c.b16 %v1527, %v1525
  %v1722 = vpack.c.b16 %v1528, %v1526
  %v1723 = vpack.c.b16 %v1531, %v1529
  %v1724 = vpack.c.b16 %v1532, %v1530
  %v1725 = vpack.c.b16 %v1535, %v1533
  %v1726 = vpack.c.b16 %v1536, %v1534
  %v1727 = vpack.c.b16 %v1539, %v1537
  %v1728 = vpack.c.b16 %v1540, %v1538
  %v1729 = vpack.c.b16 %v1543, %v1541
  %v1730 = vpack.c.b16 %v1544, %v1542
  %v1731 = vpack.c.b16 %v1547, %v1545
  %v1732 = vpack.c.b16 %v1548, %v1546
  %v1733 = vpack.c.b16 %v1551, %v1549
  %v1734 = vpack.c.b16 %v1552, %v1550
  %v1735 = vpack.c.b16 %v1555, %v1553
  %v1736 = vpack.c.b16 %v1556, %v1554
  %v1737 = vpack.c.b16 %v1559, %v1557
  %v1738 = vpack.c.b16 %v1560, %v1558
  %v1739 = vpack.c.b16 %v1563, %v1561
  %v1740 = vpack.c.b16 %v1564, %v1562
  %v1741 = vpack.c.b16 %v1567, %v1565
  %v1742 = vpack.c.b16 %v1568, %v1566
  %v1743 = vpack.c.b16 %v1571, %v1569
  %v1744 = vpack.c.b16 %v1572, %v1570
  %v1745 = vpack.c.b16 %v1575, %v1573
  %v1746 = vpack.c.b16 %v1576, %v1574
  %v1747 = vpack.c.b16 %v1579, %v1577
  %v1748 = vpack.c.b16 %v1580, %v1578
  %v1749 = vpack.c.b16 %v1583, %v1581
  %v1750 = vpack.c.b16 %v1584, %v1582
  %v1751 = vpack.c.b16 %v1587, %v1585
  %v1752 = vpack.c.b16 %v1588, %v1586
  %v1753 = vpack.c.b16 %v1591, %v1589
  %v1754 = vpack.c.b16 %v1592, %v1590
  %v1755 = vpack.c.b16 %v1595, %v1593
  %v1756 = vpack.c.b16 %v1596, %v1594
  %v1757 = vpack.c.b16 %v1599, %v1597
  %v1758 = vpack.c.b16 %v1600, %v1598
  %v1759 = vpack.c.b16 %v1603, %v1601
  %v1760 = vpack.c.b16 %v1604, %v1602
  %v1761 = vpack.c.b16 %v1607, %v1605
  %v1762 = vpack.c.b16 %v1608, %v1606
  %v1763 = vpack.c.b16 %v1611, %v1609
  %v1764 = vpack.c.b16 %v1612, %v1610
  %v1765 = vpack.c.b16 %v1615, %v1613
  %v1766 = vpack.c.b16 %v1616, %v1614
  %v1767 = vpack.c.b16 %v1619, %v1617
  %v1768 = vpack.c.b16 %v1620, %v1618
  %v1769 = vpack.c.b16 %v1623, %v1621
  %v1770 = vpack.c.b16 %v1624, %v1622
  %v1771 = vpack.c.b16 %v1627, %v1625
  %v1772 = vpack.c.b16 %v1628, %v1626
  %v1773 = vpack.c.b16 %v1631, %v1629
  %v1774 = vpack.c.b16 %v1632, %v1630
  %v1775 = vpack.c.b16 %v1635, %v1633
  %v1776 = vpack.c.b16 %v1636, %v1634
  %v1777 = vpack.c.b16 %v1639, %v1637
  %v1778 = vpack.c.b16 %v1640, %v1638
  %v1779 = vpack.c.b16 %v1643, %v1641
  %v1780 = vpack.c.b16 %v1644, %v1642
  %v1781 = vpack.c.b16 %v1647, %v1645
  %v1782 = vpack.c.b16 %v1648, %v1646
  %v1783 = vpack.c.b16 %v1651, %v1649
  %v1784 = vpack.c.b16 %v1652, %v1650
  %v1785 = vpack.c.b16 %v1655, %v1653
  %v1786 = vpack.c.b16 %v1656, %v1654
  %v1787 = vpack.c.b16 %v1659, %v1657
  %v1788 = vpack.c.b16 %v1660, %v1658
  %1917 = vmatprep.subr.bf16.mxu0 %v1662
  %1918 = vmatpush1.bf16.msra.mxu0 %v1661
  %1919 = vmatprep.subr.bf16.mxu0 %v1664
  %1920 = vmatpush1.bf16.msra.mxu0 %v1663
  %1921 = vmatprep.subr.bf16.mxu0 %v1666
  %1922 = vmatpush1.bf16.msra.mxu0 %v1665
  %1923 = vmatprep.subr.bf16.mxu0 %v1668
  %1924 = vmatpush1.bf16.msra.mxu0 %v1667
  %1925 = vmatprep.subr.bf16.mxu0 %v1670
  %1926 = vmatpush1.bf16.msra.mxu0 %v1669
  %1927 = vmatprep.subr.bf16.mxu0 %v1672
  %1928 = vmatpush1.bf16.msra.mxu0 %v1671
  %1929 = vmatprep.subr.bf16.mxu0 %v1674
  %1930 = vmatpush1.bf16.msra.mxu0 %v1673
  %1931 = vmatprep.subr.bf16.mxu0 %v1676
  %1932 = vmatpush1.bf16.msra.mxu0 %v1675
  %1933 = vmatprep.subr.bf16.mxu0 %v1678
  %1934 = vmatpush1.bf16.msra.mxu0 %v1677
  %1935 = vmatprep.subr.bf16.mxu0 %v1680
  %1936 = vmatpush1.bf16.msra.mxu0 %v1679
  %1937 = vmatprep.subr.bf16.mxu0 %v1682
  %1938 = vmatpush1.bf16.msra.mxu0 %v1681
  %1939 = vmatprep.subr.bf16.mxu0 %v1684
  %1940 = vmatpush1.bf16.msra.mxu0 %v1683
  %1941 = vmatprep.subr.bf16.mxu0 %v1686
  %1942 = vmatpush1.bf16.msra.mxu0 %v1685
  %1943 = vmatprep.subr.bf16.mxu0 %v1688
  %1944 = vmatpush1.bf16.msra.mxu0 %v1687
  %1945 = vmatprep.subr.bf16.mxu0 %v1690
  %1946 = vmatpush1.bf16.msra.mxu0 %v1689
  %1947 = vmatprep.subr.bf16.mxu0 %v1692
  %1948 = vmatpush1.bf16.msra.mxu0 %v1691
  %1949 = vmatprep.mubr.bf16.mxu0 %v1130
  %1950 = vmatmul.mubr.bf16.gmra.mrb[0].mxu0 %v1129
  %v1951 = vpop.f32.mrb[0].mxu0
  %v1952 = vadd.f32 %v1270, %v1951
  %v1953 = vpop.f32.mrb[0].mxu0
  %v1954 = vadd.f32 %v1274, %v1953
  %v1955 = vpop.f32.mrb[0].mxu0
  %v1956 = vpop.f32.mrb[0].mxu0
  %1957 = vdwg.mxu0
  %1958 = vmatprep.subr.bf16.mxu0 %v1694
  %1959 = vmatpush1.bf16.msra.mxu0 %v1693
  %1960 = vmatprep.subr.bf16.mxu0 %v1696
  %1961 = vmatpush1.bf16.msra.mxu0 %v1695
  %1962 = vmatprep.subr.bf16.mxu0 %v1698
  %1963 = vmatpush1.bf16.msra.mxu0 %v1697
  %1964 = vmatprep.subr.bf16.mxu0 %v1700
  %1965 = vmatpush1.bf16.msra.mxu0 %v1699
  %1966 = vmatprep.subr.bf16.mxu0 %v1702
  %1967 = vmatpush1.bf16.msra.mxu0 %v1701
  %1968 = vmatprep.subr.bf16.mxu0 %v1704
  %1969 = vmatpush1.bf16.msra.mxu0 %v1703
  %1970 = vmatprep.subr.bf16.mxu0 %v1706
  %1971 = vmatpush1.bf16.msra.mxu0 %v1705
  %1972 = vmatprep.subr.bf16.mxu0 %v1708
  %1973 = vmatpush1.bf16.msra.mxu0 %v1707
  %1974 = vmatprep.subr.bf16.mxu0 %v1710
  %1975 = vmatpush1.bf16.msra.mxu0 %v1709
  %1976 = vmatprep.subr.bf16.mxu0 %v1712
  %1977 = vmatpush1.bf16.msra.mxu0 %v1711
  %1978 = vmatprep.subr.bf16.mxu0 %v1714
  %1979 = vmatpush1.bf16.msra.mxu0 %v1713
  %1980 = vmatprep.subr.bf16.mxu0 %v1716
  %1981 = vmatpush1.bf16.msra.mxu0 %v1715
  %1982 = vmatprep.subr.bf16.mxu0 %v1718
  %1983 = vmatpush1.bf16.msra.mxu0 %v1717
  %1984 = vmatprep.subr.bf16.mxu0 %v1720
  %1985 = vmatpush1.bf16.msra.mxu0 %v1719
  %1986 = vmatprep.subr.bf16.mxu0 %v1722
  %1987 = vmatpush1.bf16.msra.mxu0 %v1721
  %1988 = vmatprep.subr.bf16.mxu0 %v1724
  %1989 = vmatpush1.bf16.msra.mxu0 %v1723
  %1990 = vmatprep.mubr.bf16.mxu0 %v1132
  %1991 = vmatmul.mubr.bf16.gmra.mrb[0].mxu0 %v1131
  %v1992 = vpop.f32.mrb[0].mxu0
  %v1993 = vadd.f32 %v1952, %v1992
  %v1994 = vpop.f32.mrb[0].mxu0
  %v1995 = vadd.f32 %v1954, %v1994
  %v1996 = vpop.f32.mrb[0].mxu0
  %v1997 = vpop.f32.mrb[0].mxu0
  %1998 = vdwg.mxu0
  %1999 = vmatprep.subr.bf16.mxu0 %v1726
  %2000 = vmatpush1.bf16.msra.mxu0 %v1725
  %2001 = vmatprep.subr.bf16.mxu0 %v1728
  %2002 = vmatpush1.bf16.msra.mxu0 %v1727
  %2003 = vmatprep.subr.bf16.mxu0 %v1730
  %2004 = vmatpush1.bf16.msra.mxu0 %v1729
  %2005 = vmatprep.subr.bf16.mxu0 %v1732
  %2006 = vmatpush1.bf16.msra.mxu0 %v1731
  %2007 = vmatprep.subr.bf16.mxu0 %v1734
  %2008 = vmatpush1.bf16.msra.mxu0 %v1733
  %2009 = vmatprep.subr.bf16.mxu0 %v1736
  %2010 = vmatpush1.bf16.msra.mxu0 %v1735
  %2011 = vmatprep.subr.bf16.mxu0 %v1738
  %2012 = vmatpush1.bf16.msra.mxu0 %v1737
  %2013 = vmatprep.subr.bf16.mxu0 %v1740
  %2014 = vmatpush1.bf16.msra.mxu0 %v1739
  %2015 = vmatprep.subr.bf16.mxu0 %v1742
  %2016 = vmatpush1.bf16.msra.mxu0 %v1741
  %2017 = vmatprep.subr.bf16.mxu0 %v1744
  %2018 = vmatpush1.bf16.msra.mxu0 %v1743
  %2019 = vmatprep.subr.bf16.mxu0 %v1746
  %2020 = vmatpush1.bf16.msra.mxu0 %v1745
  %2021 = vmatprep.subr.bf16.mxu0 %v1748
  %2022 = vmatpush1.bf16.msra.mxu0 %v1747
  %2023 = vmatprep.subr.bf16.mxu0 %v1750
  %2024 = vmatpush1.bf16.msra.mxu0 %v1749
  %2025 = vmatprep.subr.bf16.mxu0 %v1752
  %2026 = vmatpush1.bf16.msra.mxu0 %v1751
  %2027 = vmatprep.subr.bf16.mxu0 %v1754
  %2028 = vmatpush1.bf16.msra.mxu0 %v1753
  %2029 = vmatprep.subr.bf16.mxu0 %v1756
  %2030 = vmatpush1.bf16.msra.mxu0 %v1755
  %2031 = vmatprep.mubr.bf16.mxu0 %v1134
  %2032 = vmatmul.mubr.bf16.gmra.mrb[0].mxu0 %v1133
  %v2033 = vpop.f32.mrb[0].mxu0
  %v2034 = vadd.f32 %v1993, %v2033
  %v2035 = vpop.f32.mrb[0].mxu0
  %v2036 = vadd.f32 %v1995, %v2035
  %v2037 = vpop.f32.mrb[0].mxu0
  %v2038 = vpop.f32.mrb[0].mxu0
  %2039 = vdwg.mxu0
  %2040 = vmatprep.subr.bf16.mxu0 %v1758
  %2041 = vmatpush1.bf16.msra.mxu0 %v1757
  %2042 = vmatprep.subr.bf16.mxu0 %v1760
  %2043 = vmatpush1.bf16.msra.mxu0 %v1759
  %2044 = vmatprep.subr.bf16.mxu0 %v1762
  %2045 = vmatpush1.bf16.msra.mxu0 %v1761
  %2046 = vmatprep.subr.bf16.mxu0 %v1764
  %2047 = vmatpush1.bf16.msra.mxu0 %v1763
  %2048 = vmatprep.subr.bf16.mxu0 %v1766
  %2049 = vmatpush1.bf16.msra.mxu0 %v1765
  %2050 = vmatprep.subr.bf16.mxu0 %v1768
  %2051 = vmatpush1.bf16.msra.mxu0 %v1767
  %2052 = vmatprep.subr.bf16.mxu0 %v1770
  %2053 = vmatpush1.bf16.msra.mxu0 %v1769
  %2054 = vmatprep.subr.bf16.mxu0 %v1772
  %2055 = vmatpush1.bf16.msra.mxu0 %v1771
  %2056 = vmatprep.subr.bf16.mxu0 %v1774
  %2057 = vmatpush1.bf16.msra.mxu0 %v1773
  %2058 = vmatprep.subr.bf16.mxu0 %v1776
  %2059 = vmatpush1.bf16.msra.mxu0 %v1775
  %2060 = vmatprep.subr.bf16.mxu0 %v1778
  %2061 = vmatpush1.bf16.msra.mxu0 %v1777
  %2062 = vmatprep.subr.bf16.mxu0 %v1780
  %2063 = vmatpush1.bf16.msra.mxu0 %v1779
  %2064 = vmatprep.subr.bf16.mxu0 %v1782
  %2065 = vmatpush1.bf16.msra.mxu0 %v1781
  %2066 = vmatprep.subr.bf16.mxu0 %v1784
  %2067 = vmatpush1.bf16.msra.mxu0 %v1783
  %2068 = vmatprep.subr.bf16.mxu0 %v1786
  %2069 = vmatpush1.bf16.msra.mxu0 %v1785
  %2070 = vmatprep.subr.bf16.mxu0 %v1788
  %2071 = vmatpush1.bf16.msra.mxu0 %v1787
  %2072 = vmatprep.mubr.bf16.mxu0 %v1136
  %2073 = vmatmul.mubr.bf16.gmra.mrb[0].mxu0 %v1135
  %v2074 = vpop.f32.mrb[0].mxu0
  %v2075 = vadd.f32 %v2034, %v2074
  %v2076 = vpop.f32.mrb[0].mxu0
  %v2077 = vadd.f32 %v2036, %v2076
  %v2078 = vpop.f32.mrb[0].mxu0
  %v2079 = vpop.f32.mrb[0].mxu0
  %2080 = vdwg.mxu0
  %v2081 = vmax.f32 %v2075, 0.0
  %v2082 = vmax.f32 %v2077, 0.0
  %v2083 = vld [vmem:[%s1] sm:$0x3]
  %v2084 = vpack.c.bf16 %v2083, %v2083
  %v2085 = vld [vmem:[%s2 + $0x9a8] sm:$0xf]
  %v2086 = vld [vmem:[%s2 + $0x9b4] sm:$0xf]
  %v2087 = vld [vmem:[%s2 + $0x9c0] sm:$0x1]
  %v2088 = vpack.c.bf16 %v2081, %v2081
  %v2089 = vpack.c.bf16 %v2082, %v2082
  %v2090 = vld [vmem:[%s2 + $0x9cc] sm:$0xf]
  %v2091 = vld [vmem:[%s2 + $0x9d8] sm:$0xf]
  %v2092 = vld [vmem:[%s2 + $0x9e4] sm:$0xf]
  %v2093 = vld [vmem:[%s2 + $0x9f0] sm:$0xf]
  %v2094 = vld [vmem:[%s2 + $0x9fc] sm:$0xf]
  %v2095 = vld [vmem:[%s2 + $0xa08] sm:$0xf]
  %v2096 = vld [vmem:[%s2 + $0xa14] sm:$0xf]
  %v2097 = vld [vmem:[%s2 + $0xa20] sm:$0xf]
  %v2098 = vld [vmem:[%s2 + $0xa2c] sm:$0xf]
  %v2099 = vld [vmem:[%s2 + $0xa38] sm:$0xf]
  %v2100 = vld [vmem:[%s2 + $0xa44] sm:$0xf]
  %v2101 = vld [vmem:[%s2 + $0xa50] sm:$0xf]
  %v2102 = vld [vmem:[%s2 + $0xa5c] sm:$0xf]
  %v2103 = vld [vmem:[%s2 + $0xa68] sm:$0xf]
  %v2104 = vld [vmem:[%s2 + $0xa74] sm:$0xf]
  %v2105 = vld [vmem:[%s2 + $0xa80] sm:$0xf]
  %v2106 = vld [vmem:[%s2 + $0xa8c] sm:$0xf]
  %v2107 = vld [vmem:[%s2 + $0xa98] sm:$0xf]
  %v2108 = vld [vmem:[%s2 + $0xaa4] sm:$0xf]
  %v2109 = vld [vmem:[%s2 + $0xab0] sm:$0xf]
  %v2110 = vld [vmem:[%s2 + $0xabc] sm:$0xf]
  %v2111 = vld [vmem:[%s2 + $0xac8] sm:$0xf]
  %v2112 = vld [vmem:[%s2 + $0xad4] sm:$0xf]
  %v2113 = vld [vmem:[%s2 + $0xae0] sm:$0xf]
  %v2114 = vld [vmem:[%s2 + $0xaec] sm:$0xf]
  %v2115 = vld [vmem:[%s2 + $0xaf8] sm:$0xf]
  %v2116 = vld [vmem:[%s2 + $0xb04] sm:$0xf]
  %v2117 = vld [vmem:[%s2 + $0xb10] sm:$0xf]
  %v2118 = vld [vmem:[%s2 + $0xb1c] sm:$0xf]
  %v2119 = vld [vmem:[%s2 + $0xb28] sm:$0xf]
  %v2120 = vld [vmem:[%s2 + $0xb34] sm:$0xf]
  %v2121 = vld [vmem:[%s2 + $0xb40] sm:$0xf]
  %v2154 = vunpack.c.l.b16 %v2090
  %v2155 = vunpack.c.l.b16 %v2091
  %v2156 = vunpack.c.l.b16 %v2092
  %v2157 = vunpack.c.l.b16 %v2093
  %v2158 = vunpack.c.l.b16 %v2094
  %v2159 = vunpack.c.l.b16 %v2095
  %v2160 = vunpack.c.l.b16 %v2096
  %v2161 = vunpack.c.l.b16 %v2097
  %v2162 = vunpack.c.l.b16 %v2098
  %v2163 = vunpack.c.l.b16 %v2099
  %v2164 = vunpack.c.l.b16 %v2100
  %v2165 = vunpack.c.l.b16 %v2101
  %v2166 = vunpack.c.l.b16 %v2102
  %v2167 = vunpack.c.l.b16 %v2103
  %v2168 = vunpack.c.l.b16 %v2104
  %v2169 = vunpack.c.l.b16 %v2105
  %v2170 = vunpack.c.l.b16 %v2106
  %v2171 = vunpack.c.l.b16 %v2107
  %v2172 = vunpack.c.l.b16 %v2108
  %v2173 = vunpack.c.l.b16 %v2109
  %v2174 = vunpack.c.l.b16 %v2110
  %v2175 = vunpack.c.l.b16 %v2111
  %v2176 = vunpack.c.l.b16 %v2112
  %v2177 = vunpack.c.l.b16 %v2113
  %v2178 = vunpack.c.l.b16 %v2114
  %v2179 = vunpack.c.l.b16 %v2115
  %v2180 = vunpack.c.l.b16 %v2116
  %v2181 = vunpack.c.l.b16 %v2117
  %v2182 = vunpack.c.l.b16 %v2118
  %v2183 = vunpack.c.l.b16 %v2119
  %v2184 = vunpack.c.l.b16 %v2120
  %v2185 = vunpack.c.l.b16 %v2121
  %v2186 = vpack.c.b16 %v2155, %v2154
  %v2187 = vpack.c.b16 %v2157, %v2156
  %v2188 = vpack.c.b16 %v2159, %v2158
  %v2189 = vpack.c.b16 %v2161, %v2160
  %v2190 = vpack.c.b16 %v2163, %v2162
  %v2191 = vpack.c.b16 %v2165, %v2164
  %v2192 = vpack.c.b16 %v2167, %v2166
  %v2193 = vpack.c.b16 %v2169, %v2168
  %v2194 = vpack.c.b16 %v2171, %v2170
  %v2195 = vpack.c.b16 %v2173, %v2172
  %v2196 = vpack.c.b16 %v2175, %v2174
  %v2197 = vpack.c.b16 %v2177, %v2176
  %v2198 = vpack.c.b16 %v2179, %v2178
  %v2199 = vpack.c.b16 %v2181, %v2180
  %v2200 = vpack.c.b16 %v2183, %v2182
  %v2201 = vpack.c.b16 %v2185, %v2184
  %2218 = vmatprep.subr.bf16.mxu0 0
  %2219 = vmatpush1.bf16.msra.mxu0 %v2186
  %2220 = vmatprep.subr.bf16.mxu0 0
  %2221 = vmatpush1.bf16.msra.mxu0 %v2187
  %2222 = vmatprep.subr.bf16.mxu0 0
  %2223 = vmatpush1.bf16.msra.mxu0 %v2188
  %2224 = vmatprep.subr.bf16.mxu0 0
  %2225 = vmatpush1.bf16.msra.mxu0 %v2189
  %2226 = vmatprep.subr.bf16.mxu0 0
  %2227 = vmatpush1.bf16.msra.mxu0 %v2190
  %2228 = vmatprep.subr.bf16.mxu0 0
  %2229 = vmatpush1.bf16.msra.mxu0 %v2191
  %2230 = vmatprep.subr.bf16.mxu0 0
  %2231 = vmatpush1.bf16.msra.mxu0 %v2192
  %2232 = vmatprep.subr.bf16.mxu0 0
  %2233 = vmatpush1.bf16.msra.mxu0 %v2193
  %2234 = vmatprep.subr.bf16.mxu0 0
  %2235 = vmatpush1.bf16.msra.mxu0 %v2194
  %2236 = vmatprep.subr.bf16.mxu0 0
  %2237 = vmatpush1.bf16.msra.mxu0 %v2195
  %2238 = vmatprep.subr.bf16.mxu0 0
  %2239 = vmatpush1.bf16.msra.mxu0 %v2196
  %2240 = vmatprep.subr.bf16.mxu0 0
  %2241 = vmatpush1.bf16.msra.mxu0 %v2197
  %2242 = vmatprep.subr.bf16.mxu0 0
  %2243 = vmatpush1.bf16.msra.mxu0 %v2198
  %2244 = vmatprep.subr.bf16.mxu0 0
  %2245 = vmatpush1.bf16.msra.mxu0 %v2199
  %2246 = vmatprep.subr.bf16.mxu0 0
  %2247 = vmatpush1.bf16.msra.mxu0 %v2200
  %2248 = vmatprep.subr.bf16.mxu0 0
  %2249 = vmatpush1.bf16.msra.mxu0 %v2201
  %2250 = vmatprep.mubr.bf16.mxu0 %v2089
  %2251 = vmatmul.mubr.bf16.gmra.mrb[0].mxu0 %v2088
  %v2252 = vpop.f32.mrb[0].mxu0
  %v2253 = vadd.f32 0.0, %v2252
  %v2254 = vpop.f32.mrb[0].mxu0
  %v2255 = vpop.f32.mrb[0].mxu0
  %v2256 = vpop.f32.mrb[0].mxu0
  %2257 = vdwg.mxu0
  %v2261 = vunpack.c.l.b16 %v2085
  %v2262 = vunpack.c.l.b16 %v2086
  %v2263 = vunpack.c.l.b16 %v2087
  %v2264 = vpack.c.b16 %v2262, %v2261
  %v2265 = vpack.c.b16 %v2263, %v2263
  %vm2267 = vcmask 138240
  %v2269 = vsel %vm2267, %v2084, 0
  %vm2271 = vcmask 1040384
  %v2272 = vsel 0, 4294967295, 65535
  %v2273 = vsel %vm2271, %v2272, 0
  %v2275 = vand.u32 %v2265, %v2273
  %2277 = vmatprep.subr.bf16.mxu0 0
  %2278 = vmatpush1.bf16.msra.mxu0 %v2264
  %2279 = vmatprep.subr.bf16.mxu0 0
  %2280 = vmatpush1.bf16.msra.mxu0 %v2275
  %2281 = vmatprep.subr.bf16.mxu0 0
  %2282 = vmatpush1.bf16.msra.mxu0 0
  %2283 = vmatprep.subr.bf16.mxu0 0
  %2284 = vmatpush1.bf16.msra.mxu0 0
  %2285 = vmatprep.subr.bf16.mxu0 0
  %2286 = vmatpush1.bf16.msra.mxu0 0
  %2287 = vmatprep.subr.bf16.mxu0 0
  %2288 = vmatpush1.bf16.msra.mxu0 0
  %2289 = vmatprep.subr.bf16.mxu0 0
  %2290 = vmatpush1.bf16.msra.mxu0 0
  %2291 = vmatprep.subr.bf16.mxu0 0
  %2292 = vmatpush1.bf16.msra.mxu0 0
  %2293 = vmatprep.subr.bf16.mxu0 0
  %2294 = vmatpush1.bf16.msra.mxu0 0
  %2295 = vmatprep.subr.bf16.mxu0 0
  %2296 = vmatpush1.bf16.msra.mxu0 0
  %2297 = vmatprep.subr.bf16.mxu0 0
  %2298 = vmatpush1.bf16.msra.mxu0 0
  %2299 = vmatprep.subr.bf16.mxu0 0
  %2300 = vmatpush1.bf16.msra.mxu0 0
  %2301 = vmatprep.subr.bf16.mxu0 0
  %2302 = vmatpush1.bf16.msra.mxu0 0
  %2303 = vmatprep.subr.bf16.mxu0 0
  %2304 = vmatpush1.bf16.msra.mxu0 0
  %2305 = vmatprep.subr.bf16.mxu0 0
  %2306 = vmatpush1.bf16.msra.mxu0 0
  %2307 = vmatprep.subr.bf16.mxu0 0
  %2308 = vmatpush1.bf16.msra.mxu0 0
  %2309 = vmatprep.mubr.bf16.mxu0 0
  %2310 = vmatmul.mubr.bf16.gmra.mrb[0].mxu0 %v2269
  %v2311 = vpop.f32.mrb[0].mxu0
  %v2312 = vadd.f32 %v2253, %v2311
  %v2313 = vpop.f32.mrb[0].mxu0
  %v2314 = vpop.f32.mrb[0].mxu0
  %v2315 = vpop.f32.mrb[0].mxu0
  %2316 = vdwg.mxu0
  %v2317 = vld [vmem:[%s3 + $0x3] sm:$0x1]
  %v2319 = vlaneseq
  %v2320 = vshrl.u32 %v2319, 7
  %v2321 = vsub.s32 0, %v2320
  %v2322 = vrot.slane %v2317, %v2321
  %v2324 = vadd.f32 %v2312, %v2322
  %v2325 = vtanh.pop %v2324
  %v2326 = vpack.c.bf16 %v2325, %v2325
  %v2327 = vld [vmem:[%s2 + $0xb4c] sm:$0xf]
  %v2328 = vld [vmem:[%s2 + $0xb58] sm:$0xf]
  %v2329 = vld [vmem:[%s2 + $0xb64] sm:$0xf]
  %v2330 = vld [vmem:[%s2 + $0xb70] sm:$0xf]
  %v2331 = vld [vmem:[%s2 + $0xb7c] sm:$0xf]
  %v2332 = vld [vmem:[%s2 + $0xb88] sm:$0xf]
  %v2333 = vld [vmem:[%s2 + $0xb94] sm:$0xf]
  %v2334 = vld [vmem:[%s2 + $0xba0] sm:$0xf]
  %v2335 = vld [vmem:[%s2 + $0xbac] sm:$0xf]
  %v2336 = vld [vmem:[%s2 + $0xbb8] sm:$0xf]
  %v2337 = vld [vmem:[%s2 + $0xbc4] sm:$0xf]
  %v2338 = vld [vmem:[%s2 + $0xbd0] sm:$0xf]
  %v2339 = vld [vmem:[%s2 + $0xbdc] sm:$0xf]
  %v2340 = vld [vmem:[%s2 + $0xbe8] sm:$0xf]
  %v2341 = vld [vmem:[%s2 + $0xbf4] sm:$0xf]
  %v2342 = vld [vmem:[%s2 + $0xc00] sm:$0xf]
  %v2343 = vld [vmem:[%s3 + $0x4] sm:$0x1]
  %v2345 = vlaneseq
  %v2346 = vshrl.u32 %v2345, 7
  %v2347 = vsub.s32 0, %v2346
  %v2348 = vrot.slane %v2343, %v2347
  %v2366 = vunpack.c.l.b16 %v2327
  %v2367 = vunpack.c.l.b16 %v2328
  %v2368 = vunpack.c.l.b16 %v2329
  %v2369 = vunpack.c.l.b16 %v2330
  %v2370 = vunpack.c.l.b16 %v2331
  %v2371 = vunpack.c.l.b16 %v2332
  %v2372 = vunpack.c.l.b16 %v2333
  %v2373 = vunpack.c.l.b16 %v2334
  %v2374 = vunpack.c.l.b16 %v2335
  %v2375 = vunpack.c.l.b16 %v2336
  %v2376 = vunpack.c.l.b16 %v2337
  %v2377 = vunpack.c.l.b16 %v2338
  %v2378 = vunpack.c.l.b16 %v2339
  %v2379 = vunpack.c.l.b16 %v2340
  %v2380 = vunpack.c.l.b16 %v2341
  %v2381 = vunpack.c.l.b16 %v2342
  %v2382 = vpack.c.b16 %v2367, %v2366
  %v2383 = vpack.c.b16 %v2369, %v2368
  %v2384 = vpack.c.b16 %v2371, %v2370
  %v2385 = vpack.c.b16 %v2373, %v2372
  %v2386 = vpack.c.b16 %v2375, %v2374
  %v2387 = vpack.c.b16 %v2377, %v2376
  %v2388 = vpack.c.b16 %v2379, %v2378
  %v2389 = vpack.c.b16 %v2381, %v2380
  %2398 = vmatprep.subr.bf16.mxu0 0
  %2399 = vmatpush1.bf16.msra.mxu0 %v2382
  %2400 = vmatprep.subr.bf16.mxu0 0
  %2401 = vmatpush1.bf16.msra.mxu0 %v2383
  %2402 = vmatprep.subr.bf16.mxu0 0
  %2403 = vmatpush1.bf16.msra.mxu0 %v2384
  %2404 = vmatprep.subr.bf16.mxu0 0
  %2405 = vmatpush1.bf16.msra.mxu0 %v2385
  %2406 = vmatprep.subr.bf16.mxu0 0
  %2407 = vmatpush1.bf16.msra.mxu0 %v2386
  %2408 = vmatprep.subr.bf16.mxu0 0
  %2409 = vmatpush1.bf16.msra.mxu0 %v2387
  %2410 = vmatprep.subr.bf16.mxu0 0
  %2411 = vmatpush1.bf16.msra.mxu0 %v2388
  %2412 = vmatprep.subr.bf16.mxu0 0
  %2413 = vmatpush1.bf16.msra.mxu0 %v2389
  %2414 = vmatprep.subr.bf16.mxu0 0
  %2415 = vmatpush1.bf16.msra.mxu0 0
  %2416 = vmatprep.subr.bf16.mxu0 0
  %2417 = vmatpush1.bf16.msra.mxu0 0
  %2418 = vmatprep.subr.bf16.mxu0 0
  %2419 = vmatpush1.bf16.msra.mxu0 0
  %2420 = vmatprep.subr.bf16.mxu0 0
  %2421 = vmatpush1.bf16.msra.mxu0 0
  %2422 = vmatprep.subr.bf16.mxu0 0
  %2423 = vmatpush1.bf16.msra.mxu0 0
  %2424 = vmatprep.subr.bf16.mxu0 0
  %2425 = vmatpush1.bf16.msra.mxu0 0
  %2426 = vmatprep.subr.bf16.mxu0 0
  %2427 = vmatpush1.bf16.msra.mxu0 0
  %2428 = vmatprep.subr.bf16.mxu0 0
  %2429 = vmatpush1.bf16.msra.mxu0 0
  %2430 = vmatprep.mubr.bf16.mxu0 0
  %2431 = vmatmul.mubr.bf16.gmra.mrb[0].mxu0 %v2326
  %v2432 = vpop.f32.mrb[0].mxu0
  %v2433 = vadd.f32 %v2348, %v2432
  %v2434 = vpop.f32.mrb[0].mxu0
  %v2435 = vpop.f32.mrb[0].mxu0
  %v2436 = vpop.f32.mrb[0].mxu0
  %2437 = vdwg.mxu0
  %v2438 = vtanh.pop %v2433
  %v2439 = vpack.c.bf16 %v2438, %v2438
  %v2440 = vld [vmem:[%s2 + $0xc0c] sm:$0xf]
  %v2441 = vld [vmem:[%s2 + $0xc18] sm:$0xf]
  %v2442 = vld [vmem:[%s2 + $0xc24] sm:$0xf]
  %v2443 = vld [vmem:[%s2 + $0xc30] sm:$0xf]
  %v2444 = vld [vmem:[%s2 + $0xc3c] sm:$0xf]
  %v2445 = vld [vmem:[%s2 + $0xc48] sm:$0xf]
  %v2446 = vld [vmem:[%s2 + $0xc54] sm:$0xf]
  %v2447 = vld [vmem:[%s2 + $0xc60] sm:$0xf]
  %v2448 = vld [vmem:[%s3 + $0x5] sm:$0x1]
  %v2450 = vlaneseq
  %v2451 = vshrl.u32 %v2450, 7
  %v2452 = vsub.s32 0, %v2451
  %v2453 = vrot.slane %v2448, %v2452
  %v2463 = vunpack.c.l.b16 %v2440
  %v2464 = vunpack.c.l.b16 %v2441
  %v2465 = vunpack.c.l.b16 %v2442
  %v2466 = vunpack.c.l.b16 %v2443
  %v2467 = vunpack.c.l.b16 %v2444
  %v2468 = vunpack.c.l.b16 %v2445
  %v2469 = vunpack.c.l.b16 %v2446
  %v2470 = vunpack.c.l.b16 %v2447
  %v2471 = vpack.c.b16 %v2464, %v2463
  %v2472 = vpack.c.b16 %v2466, %v2465
  %v2473 = vpack.c.b16 %v2468, %v2467
  %v2474 = vpack.c.b16 %v2470, %v2469
  %vm2479 = vcmask 523264
  %v2481 = vsel %vm2479, %v2439, 0
  %2483 = vmatprep.subr.bf16.mxu0 0
  %2484 = vmatpush1.bf16.msra.mxu0 %v2471
  %2485 = vmatprep.subr.bf16.mxu0 0
  %2486 = vmatpush1.bf16.msra.mxu0 %v2472
  %2487 = vmatprep.subr.bf16.mxu0 0
  %2488 = vmatpush1.bf16.msra.mxu0 %v2473
  %2489 = vmatprep.subr.bf16.mxu0 0
  %2490 = vmatpush1.bf16.msra.mxu0 %v2474
  %2491 = vmatprep.subr.bf16.mxu0 0
  %2492 = vmatpush1.bf16.msra.mxu0 0
  %2493 = vmatprep.subr.bf16.mxu0 0
  %2494 = vmatpush1.bf16.msra.mxu0 0
  %2495 = vmatprep.subr.bf16.mxu0 0
  %2496 = vmatpush1.bf16.msra.mxu0 0
  %2497 = vmatprep.subr.bf16.mxu0 0
  %2498 = vmatpush1.bf16.msra.mxu0 0
  %2499 = vmatprep.subr.bf16.mxu0 0
  %2500 = vmatpush1.bf16.msra.mxu0 0
  %2501 = vmatprep.subr.bf16.mxu0 0
  %2502 = vmatpush1.bf16.msra.mxu0 0
  %2503 = vmatprep.subr.bf16.mxu0 0
  %2504 = vmatpush1.bf16.msra.mxu0 0
  %2505 = vmatprep.subr.bf16.mxu0 0
  %2506 = vmatpush1.bf16.msra.mxu0 0
  %2507 = vmatprep.subr.bf16.mxu0 0
  %2508 = vmatpush1.bf16.msra.mxu0 0
  %2509 = vmatprep.subr.bf16.mxu0 0
  %2510 = vmatpush1.bf16.msra.mxu0 0
  %2511 = vmatprep.subr.bf16.mxu0 0
  %2512 = vmatpush1.bf16.msra.mxu0 0
  %2513 = vmatprep.subr.bf16.mxu0 0
  %2514 = vmatpush1.bf16.msra.mxu0 0
  %2515 = vmatprep.mubr.bf16.mxu0 0
  %2516 = vmatmul.mubr.bf16.gmra.mrb[0].mxu0 %v2481
  %v2517 = vpop.f32.mrb[0].mxu0
  %v2518 = vadd.f32 %v2453, %v2517
  %v2519 = vpop.f32.mrb[0].mxu0
  %v2520 = vpop.f32.mrb[0].mxu0
  %v2521 = vpop.f32.mrb[0].mxu0
  %2522 = vdwg.mxu0
  %vm2523 = vcmask 58368
  %2524 = vst.msk [vmem:[%s4] sm:$0x3] %vm2523, %v2518
  // Predicated region
  $region18: #{policy_forward.1} parent=0 // pred_check
    _
  $region19: #{policy_forward.1} parent=0 // pred_check_branch
    %2526 = sbr.rel (0) target = $region21
  $region20: #{policy_forward.1} parent=0 // pred_region
    _
  $region21: #{policy_forward.1} parent=0 // pred_fallthru
    _
  // Predicated region
  $region22: #{policy_forward.1} parent=0 // pred_check
    _
  $region23: #{policy_forward.1} parent=0 // pred_check_branch
    %2528 = sbr.rel (0) target = $region25
  $region24: #{policy_forward.1} parent=0 // pred_region
    _
  $region25: #{policy_forward.1} parent=0 // pred_fallthru
    _

</llo_original>
